<compile_context>
chip_gen: v5e
topology: v5e:2x2
jax: 0.10.0
libtpu: 0.0.40
codegen_flags: <defaults>
</compile_context>

<pallas_src>
import functools

import jax
import jax.numpy as jnp
from jax.experimental import pallas as pl
from jax.experimental.pallas import tpu as pltpu


def _make_pyconv_kernel(H, W, cin, pmax, leftpad, padw, compute_dtype):
    HW = H * W
    Kmax = 2 * pmax + 1
    rightpad = padw - leftpad - HW

    def kernel(x_ref, w_ref, o_ref, xb_ref, slab_ref):
        # Zero margins: vertically out-of-range taps read zeros from here.
        # (Re-zeroed every step so correctness never depends on scratch
        # persistence / program_id==0 under megacore grid splitting.)
        if leftpad > 0:
            xb_ref[:, pl.ds(0, leftpad)] = jnp.zeros((cin, leftpad), jnp.float32)
        if rightpad > 0:
            xb_ref[:, pl.ds(leftpad + HW, rightpad)] = jnp.zeros(
                (cin, rightpad), jnp.float32)
        # Lane-aligned interior copy (leftpad is a multiple of 128).
        xb_ref[:, pl.ds(leftpad, HW)] = x_ref[0].astype(jnp.float32)

        # Column index of every flattened spatial position; masks taps that
        # would wrap horizontally into the neighbouring image row.  Built once
        # and shared across every tap / level.
        col = jax.lax.broadcasted_iota(jnp.int32, (1, HW), 1) % W
        col_mask = {dw: (col + dw >= 0) & (col + dw < W)
                    for dw in range(-pmax, pmax + 1) if dw != 0}

        # Shared im2col slab over the Kmax x Kmax window: row t*cin + c holds
        # input channel c shifted by (dh, dw) = (t//Kmax - pmax, t%Kmax - pmax).
        for kh in range(Kmax):
            dh = kh - pmax
            for kw in range(Kmax):
                dw = kw - pmax
                delta = dh * W + dw
                tap = xb_ref[:, pl.ds(leftpad + delta, HW)]        # (cin, HW)
                if dw != 0:
                    tap = jnp.where(col_mask[dw], tap, 0.0)
                t = kh * Kmax + kw
                slab_ref[pl.ds(t * cin, cin), :] = tap.astype(compute_dtype)

        # One block-diagonal MXU matmul covering every level and group,
        # f32 accumulation, single lane-dense (cout_total, HW) store.
        acc = jnp.dot(w_ref[...], slab_ref[...],
                      preferred_element_type=jnp.float32)
        o_ref[0] = acc.astype(o_ref.dtype)

    return kernel


def _pack_weights(weights, pyconv_kernels, pyconv_padding, pyconv_groups,
                  cin, pmax, compute_dtype):
    """Pack per-level grouped-conv weights into one block-diagonal matrix.

    Output (cout_total, Kmax*Kmax*cin) with column order (kh, kw, c_in) over
    the shared Kmax x Kmax window, matching the im2col slab row order.
    Columns belonging to other groups or outside a level's own KxK window are
    zero, so a single matmul reproduces every level/group exactly.
    """
    Kmax = 2 * pmax + 1
    packed = []
    for wt, K, p, G in zip(weights, pyconv_kernels, pyconv_padding, pyconv_groups):
        Cout, cin_g, _, _ = wt.shape
        cout_g = Cout // G
        w = wt.reshape(G, cout_g, cin_g, K, K)
        eye = jnp.eye(G, dtype=wt.dtype)
        # (G, cout_g, G, cin_g, K, K), zero off the group diagonal.
        w_bd = jnp.einsum("gh,gokij->gohkij", eye, w)
        w_bd = w_bd.reshape(Cout, cin, K, K)
        d = pmax - p                                  # centre in the Kmax window
        w_bd = jnp.pad(w_bd, ((0, 0), (0, 0), (d, d), (d, d)))
        w_bd = jnp.transpose(w_bd, (0, 2, 3, 1)).reshape(Cout, Kmax * Kmax * cin)
        packed.append(w_bd)
    return jnp.concatenate(packed, axis=0).astype(compute_dtype)


def pyconv2d(x_nchw, weights, pyconv_kernels, pyconv_padding, pyconv_groups,
             stride=1, dilation=1, compute_dtype=jnp.bfloat16):
    """PyConv2d.forward (stride=1, dilation=1, bias=False, 'same' padding)."""
    assert stride == 1 and dilation == 1, "only stride=1, dilation=1 supported"
    assert len(weights) == len(pyconv_kernels) == len(pyconv_padding) == len(pyconv_groups)

    N, Cin, H, W = x_nchw.shape
    HW = H * W

    cout_total = 0
    for wt, K, p, G in zip(weights, pyconv_kernels, pyconv_padding, pyconv_groups):
        Cout, cin_g, KH, KW = wt.shape
        assert KH == KW == K, "square kernels only"
        assert Cin % G == 0 and Cout % G == 0 and cin_g == Cin // G
        # TODO(synk): general (non-'same') padding not supported by the flat-shift trick.
        assert K % 2 == 1 and p == (K - 1) // 2, "only 'same' padding supported"
        cout_total += Cout

    pmax = max(pyconv_padding)
    Kmax = 2 * pmax + 1
    # Lane-aligned zero margin covering the largest |dh*W + dw| shift.
    margin = pmax * (W + 1)
    leftpad = pl.cdiv(margin, 128) * 128 if margin > 0 else 0
    padw = leftpad + HW + leftpad           # symmetric margin, lane-aligned width
    slab_rows = Kmax * Kmax * Cin

    w_packed = _pack_weights(weights, pyconv_kernels, pyconv_padding,
                             pyconv_groups, Cin, pmax, compute_dtype)

    x_flat = x_nchw.reshape(N, Cin, HW)     # free reshape: NCHW -> (N, C, H*W)

    kernel = _make_pyconv_kernel(H, W, Cin, pmax, leftpad, padw, compute_dtype)

    out_flat = pl.pallas_call(
        kernel,
        out_shape=jax.ShapeDtypeStruct((N, cout_total, HW), x_nchw.dtype),
        grid=(N,),
        in_specs=[
            pl.BlockSpec((1, Cin, HW), lambda n: (n, 0, 0)),
            pl.BlockSpec(w_packed.shape, lambda n: (0, 0)),
        ],
        out_specs=pl.BlockSpec((1, cout_total, HW), lambda n: (n, 0, 0)),
        scratch_shapes=[
            pltpu.VMEM((Cin, padw), jnp.float32),        # zero-padded flat image
            pltpu.VMEM((slab_rows, HW), compute_dtype),  # shared im2col slab
        ],
        compiler_params=pltpu.CompilerParams(
            dimension_semantics=("parallel",),
            # Tiny footprint here; 32 MiB is safe on every generation incl.
            # v7x (64 MiB physical).  Re-derive per chip when H-tiling.
            vmem_limit_bytes=32 * 1024 * 1024),
    )(x_flat, w_packed)

    return out_flat.reshape(N, cout_total, H, W)


def _reference(x_nchw, weights, kernels, paddings, groups):
    outs = []
    for w, k, p, g in zip(weights, kernels, paddings, groups):
        o = jax.lax.conv_general_dilated(
            x_nchw, w, window_strides=(1, 1), padding=[(p, p), (p, p)],
            dimension_numbers=("NCHW", "OIHW", "NCHW"), feature_group_count=g)
        outs.append(o)
    return jnp.concatenate(outs, axis=1)


if __name__ == "__main__":
    # Module config (matches PyConv2d __init__): stride=1, dilation=1, bias=False
    in_channels = 4
    out_channels = (4, 8)
    pyconv_kernels = (3, 5)
    pyconv_padding = (1, 2)
    pyconv_groups = (1, 2)

    key = jax.random.PRNGKey(0)
    kx, *kw = jax.random.split(key, 1 + len(out_channels))

    N, H, W = 2, 16, 16
    x = jax.random.normal(kx, (N, in_channels, H, W), dtype=jnp.float32)

    # Deterministic weights, PyTorch Conv2d layout (Cout, Cin//G, K, K)
    weights = []
    for i, (co, k, g) in enumerate(zip(out_channels, pyconv_kernels, pyconv_groups)):
        shape = (co, in_channels // g, k, k)
        weights.append(0.1 * jax.random.normal(kw[i], shape, dtype=jnp.float32))

    run = jax.jit(functools.partial(
        pyconv2d,
        pyconv_kernels=pyconv_kernels,
        pyconv_padding=pyconv_padding,
        pyconv_groups=pyconv_groups))
    out = jax.block_until_ready(run(x, weights))

    ref = _reference(x, weights, pyconv_kernels, pyconv_padding, pyconv_groups)
    assert out.shape == (N, sum(out_channels), H, W), out.shape
    # bf16 MXU operands with f32 accumulation: tolerance reflects the
    # documented precision change vs the pure-f32 reference path.
    assert jnp.allclose(out, ref, atol=1e-2, rtol=1e-2), "mismatch vs reference"
    print("KERNEL_OK")
</pallas_src>

<mosaic_0001>
module attributes {stable_mosaic.version = 11 : i64} {
  func.func @kernel(%arg0: i32, %arg1: memref<1x4x256xf32, #tpu.memory_space<vmem>>, %arg2: memref<12x100xbf16, #tpu.memory_space<vmem>>, %arg3: memref<1x12x256xf32, #tpu.memory_space<vmem>>, %arg4: memref<4x512xf32, #tpu.memory_space<vmem>>, %arg5: memref<100x256xbf16, #tpu.memory_space<vmem>>) attributes {dimension_semantics = [#tpu.dimension_semantics<parallel>], iteration_bounds = array<i64: 2>, scalar_prefetch = 0 : i64, scratch_operands = 2 : i64, tpu.core_type = #tpu.core_type<tc>, window_params = [{transform_indices = @transform_0, window_bounds = array<i64: 1, 4, 256>}, {pipeline_mode = #tpu.pipeline_mode<synchronous>, transform_indices = @transform_1, window_bounds = array<i64: 12, 100>}, {transform_indices = @transform_2, window_bounds = array<i64: 1, 12, 256>}]} {
    %cst = arith.constant 0.000000e+00 : f32
    %0 = vector.broadcast %cst : f32 to vector<4x128xf32>
    %c0 = arith.constant 0 : index
    %c0_0 = arith.constant 0 : index
    %1 = vector.load %arg4[%c0, %c0_0] : memref<4x512xf32, #tpu.memory_space<vmem>>, vector<4x128xf32>
    tpu.vector_store %arg4[%c0, %c0_0], %0 {strides = array<i32>} : memref<4x512xf32, #tpu.memory_space<vmem>>, vector<4x128xf32>,
    %cst_1 = arith.constant 0.000000e+00 : f32
    %2 = vector.broadcast %cst_1 : f32 to vector<4x128xf32>
    %c0_2 = arith.constant 0 : index
    %c384 = arith.constant 384 : index
    %3 = vector.load %arg4[%c0_2, %c384] : memref<4x512xf32, #tpu.memory_space<vmem>>, vector<4x128xf32>
    tpu.vector_store %arg4[%c0_2, %c384], %2 {strides = array<i32>} : memref<4x512xf32, #tpu.memory_space<vmem>>, vector<4x128xf32>,
    %c0_3 = arith.constant 0 : index
    %c0_4 = arith.constant 0 : index
    %c0_5 = arith.constant 0 : index
    %4 = vector.load %arg1[%c0_3, %c0_4, %c0_5] : memref<1x4x256xf32, #tpu.memory_space<vmem>>, vector<1x4x256xf32>
    %5 = vector.shape_cast %4 : vector<1x4x256xf32> to vector<4x256xf32>
    %c0_6 = arith.constant 0 : index
    %c128 = arith.constant 128 : index
    %6 = vector.load %arg4[%c0_6, %c128] : memref<4x512xf32, #tpu.memory_space<vmem>>, vector<4x256xf32>
    tpu.vector_store %arg4[%c0_6, %c128], %5 {strides = array<i32>} : memref<4x512xf32, #tpu.memory_space<vmem>>, vector<4x256xf32>,
    %7 = tpu.iota {dimensions = array<i32: 1>} : vector<1x256xi32>
    %c16_i32 = arith.constant 16 : i32
    %c0_i32 = arith.constant 0 : i32
    %8 = arith.cmpi eq, %c16_i32, %c0_i32 : i32
    %c1_i32 = arith.constant 1 : i32
    %9 = arith.select %8, %c1_i32, %c16_i32 : i32
    %10 = vector.broadcast %9 : i32 to vector<1x256xi32>
    %11 = arith.remsi %7, %10 : vector<1x256xi32>
    %c0_i32_7 = arith.constant 0 : i32
    %12 = vector.broadcast %c0_i32_7 : i32 to vector<1x256xi32>
    %13 = arith.cmpi ne, %11, %12 : vector<1x256xi32>
    %c0_i32_8 = arith.constant 0 : i32
    %14 = vector.broadcast %c0_i32_8 : i32 to vector<1x256xi32>
    %15 = arith.cmpi slt, %11, %14 : vector<1x256xi32>
    %c0_i32_9 = arith.constant 0 : i32
    %16 = arith.cmpi slt, %9, %c0_i32_9 : i32
    %17 = vector.broadcast %16 : i1 to vector<1x256xi1>
    %18 = vector.broadcast %17 : vector<1x256xi1> to vector<1x256xi1>
    %19 = arith.xori %15, %18 : vector<1x256xi1>
    %20 = arith.andi %19, %13 : vector<1x256xi1>
    %21 = vector.broadcast %9 : i32 to vector<1x256xi32>
    %22 = arith.addi %11, %21 : vector<1x256xi32>
    %23 = arith.select %20, %22, %11 : vector<1x256xi1>, vector<1x256xi32>
    %c-2_i32 = arith.constant -2 : i32
    %24 = vector.broadcast %c-2_i32 : i32 to vector<1x256xi32>
    %25 = arith.addi %23, %24 : vector<1x256xi32>
    %c0_i32_10 = arith.constant 0 : i32
    %26 = vector.broadcast %c0_i32_10 : i32 to vector<1x256xi32>
    %27 = arith.cmpi sge, %25, %26 : vector<1x256xi32>
    %c-2_i32_11 = arith.constant -2 : i32
    %28 = vector.broadcast %c-2_i32_11 : i32 to vector<1x256xi32>
    %29 = arith.addi %23, %28 : vector<1x256xi32>
    %c16_i32_12 = arith.constant 16 : i32
    %30 = vector.broadcast %c16_i32_12 : i32 to vector<1x256xi32>
    %31 = arith.cmpi slt, %29, %30 : vector<1x256xi32>
    %32 = arith.andi %27, %31 : vector<1x256xi1>
    %c-1_i32 = arith.constant -1 : i32
    %33 = vector.broadcast %c-1_i32 : i32 to vector<1x256xi32>
    %34 = arith.addi %23, %33 : vector<1x256xi32>
    %c0_i32_13 = arith.constant 0 : i32
    %35 = vector.broadcast %c0_i32_13 : i32 to vector<1x256xi32>
    %36 = arith.cmpi sge, %34, %35 : vector<1x256xi32>
    %c-1_i32_14 = arith.constant -1 : i32
    %37 = vector.broadcast %c-1_i32_14 : i32 to vector<1x256xi32>
    %38 = arith.addi %23, %37 : vector<1x256xi32>
    %c16_i32_15 = arith.constant 16 : i32
    %39 = vector.broadcast %c16_i32_15 : i32 to vector<1x256xi32>
    %40 = arith.cmpi slt, %38, %39 : vector<1x256xi32>
    %41 = arith.andi %36, %40 : vector<1x256xi1>
    %c1_i32_16 = arith.constant 1 : i32
    %42 = vector.broadcast %c1_i32_16 : i32 to vector<1x256xi32>
    %43 = arith.addi %23, %42 : vector<1x256xi32>
    %c0_i32_17 = arith.constant 0 : i32
    %44 = vector.broadcast %c0_i32_17 : i32 to vector<1x256xi32>
    %45 = arith.cmpi sge, %43, %44 : vector<1x256xi32>
    %c1_i32_18 = arith.constant 1 : i32
    %46 = vector.broadcast %c1_i32_18 : i32 to vector<1x256xi32>
    %47 = arith.addi %23, %46 : vector<1x256xi32>
    %c16_i32_19 = arith.constant 16 : i32
    %48 = vector.broadcast %c16_i32_19 : i32 to vector<1x256xi32>
    %49 = arith.cmpi slt, %47, %48 : vector<1x256xi32>
    %50 = arith.andi %45, %49 : vector<1x256xi1>
    %c2_i32 = arith.constant 2 : i32
    %51 = vector.broadcast %c2_i32 : i32 to vector<1x256xi32>
    %52 = arith.addi %23, %51 : vector<1x256xi32>
    %c0_i32_20 = arith.constant 0 : i32
    %53 = vector.broadcast %c0_i32_20 : i32 to vector<1x256xi32>
    %54 = arith.cmpi sge, %52, %53 : vector<1x256xi32>
    %c2_i32_21 = arith.constant 2 : i32
    %55 = vector.broadcast %c2_i32_21 : i32 to vector<1x256xi32>
    %56 = arith.addi %23, %55 : vector<1x256xi32>
    %c16_i32_22 = arith.constant 16 : i32
    %57 = vector.broadcast %c16_i32_22 : i32 to vector<1x256xi32>
    %58 = arith.cmpi slt, %56, %57 : vector<1x256xi32>
    %59 = arith.andi %54, %58 : vector<1x256xi1>
    %c0_23 = arith.constant 0 : index
    %c94 = arith.constant 94 : index
    %60 = vector.load %arg4[%c0_23, %c94] : memref<4x512xf32, #tpu.memory_space<vmem>>, vector<4x256xf32>
    %cst_24 = arith.constant 0.000000e+00 : f32
    %61 = vector.shape_cast %32 : vector<1x256xi1> to vector<1x256xi1>
    %62 = vector.broadcast %61 : vector<1x256xi1> to vector<4x256xi1>
    %63 = vector.broadcast %cst_24 : f32 to vector<4x256xf32>
    %64 = arith.select %62, %60, %63 : vector<4x256xi1>, vector<4x256xf32>
    %65 = arith.truncf %64 : vector<4x256xf32> to vector<4x256xbf16>
    %c0_25 = arith.constant 0 : index
    %c0_26 = arith.constant 0 : index
    %66 = vector.load %arg5[%c0_25, %c0_26] : memref<100x256xbf16, #tpu.memory_space<vmem>>, vector<4x256xbf16>
    tpu.vector_store %arg5[%c0_25, %c0_26], %65 {strides = array<i32>} : memref<100x256xbf16, #tpu.memory_space<vmem>>, vector<4x256xbf16>,
    %c0_27 = arith.constant 0 : index
    %c95 = arith.constant 95 : index
    %67 = vector.load %arg4[%c0_27, %c95] : memref<4x512xf32, #tpu.memory_space<vmem>>, vector<4x256xf32>
    %cst_28 = arith.constant 0.000000e+00 : f32
    %68 = vector.shape_cast %41 : vector<1x256xi1> to vector<1x256xi1>
    %69 = vector.broadcast %68 : vector<1x256xi1> to vector<4x256xi1>
    %70 = vector.broadcast %cst_28 : f32 to vector<4x256xf32>
    %71 = arith.select %69, %67, %70 : vector<4x256xi1>, vector<4x256xf32>
    %72 = arith.truncf %71 : vector<4x256xf32> to vector<4x256xbf16>
    %c4 = arith.constant 4 : index
    %c0_29 = arith.constant 0 : index
    %73 = vector.load %arg5[%c4, %c0_29] : memref<100x256xbf16, #tpu.memory_space<vmem>>, vector<4x256xbf16>
    tpu.vector_store %arg5[%c4, %c0_29], %72 {strides = array<i32>} : memref<100x256xbf16, #tpu.memory_space<vmem>>, vector<4x256xbf16>,
    %c0_30 = arith.constant 0 : index
    %c96 = arith.constant 96 : index
    %74 = vector.load %arg4[%c0_30, %c96] : memref<4x512xf32, #tpu.memory_space<vmem>>, vector<4x256xf32>
    %75 = arith.truncf %74 : vector<4x256xf32> to vector<4x256xbf16>
    %c8 = arith.constant 8 : index
    %c0_31 = arith.constant 0 : index
    %76 = vector.load %arg5[%c8, %c0_31] : memref<100x256xbf16, #tpu.memory_space<vmem>>, vector<4x256xbf16>
    tpu.vector_store %arg5[%c8, %c0_31], %75 {strides = array<i32>} : memref<100x256xbf16, #tpu.memory_space<vmem>>, vector<4x256xbf16>,
    %c0_32 = arith.constant 0 : index
    %c97 = arith.constant 97 : index
    %77 = vector.load %arg4[%c0_32, %c97] : memref<4x512xf32, #tpu.memory_space<vmem>>, vector<4x256xf32>
    %cst_33 = arith.constant 0.000000e+00 : f32
    %78 = vector.shape_cast %50 : vector<1x256xi1> to vector<1x256xi1>
    %79 = vector.broadcast %78 : vector<1x256xi1> to vector<4x256xi1>
    %80 = vector.broadcast %cst_33 : f32 to vector<4x256xf32>
    %81 = arith.select %79, %77, %80 : vector<4x256xi1>, vector<4x256xf32>
    %82 = arith.truncf %81 : vector<4x256xf32> to vector<4x256xbf16>
    %c12 = arith.constant 12 : index
    %c0_34 = arith.constant 0 : index
    %83 = vector.load %arg5[%c12, %c0_34] : memref<100x256xbf16, #tpu.memory_space<vmem>>, vector<4x256xbf16>
    tpu.vector_store %arg5[%c12, %c0_34], %82 {strides = array<i32>} : memref<100x256xbf16, #tpu.memory_space<vmem>>, vector<4x256xbf16>,
    %c0_35 = arith.constant 0 : index
    %c98 = arith.constant 98 : index
    %84 = vector.load %arg4[%c0_35, %c98] : memref<4x512xf32, #tpu.memory_space<vmem>>, vector<4x256xf32>
    %cst_36 = arith.constant 0.000000e+00 : f32
    %85 = vector.shape_cast %59 : vector<1x256xi1> to vector<1x256xi1>
    %86 = vector.broadcast %85 : vector<1x256xi1> to vector<4x256xi1>
    %87 = vector.broadcast %cst_36 : f32 to vector<4x256xf32>
    %88 = arith.select %86, %84, %87 : vector<4x256xi1>, vector<4x256xf32>
    %89 = arith.truncf %88 : vector<4x256xf32> to vector<4x256xbf16>
    %c16 = arith.constant 16 : index
    %c0_37 = arith.constant 0 : index
    %90 = vector.load %arg5[%c16, %c0_37] : memref<100x256xbf16, #tpu.memory_space<vmem>>, vector<4x256xbf16>
    tpu.vector_store %arg5[%c16, %c0_37], %89 {strides = array<i32>} : memref<100x256xbf16, #tpu.memory_space<vmem>>, vector<4x256xbf16>,
    %c0_38 = arith.constant 0 : index
    %c110 = arith.constant 110 : index
    %91 = vector.load %arg4[%c0_38, %c110] : memref<4x512xf32, #tpu.memory_space<vmem>>, vector<4x256xf32>
    %cst_39 = arith.constant 0.000000e+00 : f32
    %92 = vector.shape_cast %32 : vector<1x256xi1> to vector<1x256xi1>
    %93 = vector.broadcast %92 : vector<1x256xi1> to vector<4x256xi1>
    %94 = vector.broadcast %cst_39 : f32 to vector<4x256xf32>
    %95 = arith.select %93, %91, %94 : vector<4x256xi1>, vector<4x256xf32>
    %96 = arith.truncf %95 : vector<4x256xf32> to vector<4x256xbf16>
    %c20 = arith.constant 20 : index
    %c0_40 = arith.constant 0 : index
    %97 = vector.load %arg5[%c20, %c0_40] : memref<100x256xbf16, #tpu.memory_space<vmem>>, vector<4x256xbf16>
    tpu.vector_store %arg5[%c20, %c0_40], %96 {strides = array<i32>} : memref<100x256xbf16, #tpu.memory_space<vmem>>, vector<4x256xbf16>,
    %c0_41 = arith.constant 0 : index
    %c111 = arith.constant 111 : index
    %98 = vector.load %arg4[%c0_41, %c111] : memref<4x512xf32, #tpu.memory_space<vmem>>, vector<4x256xf32>
    %cst_42 = arith.constant 0.000000e+00 : f32
    %99 = vector.shape_cast %41 : vector<1x256xi1> to vector<1x256xi1>
    %100 = vector.broadcast %99 : vector<1x256xi1> to vector<4x256xi1>
    %101 = vector.broadcast %cst_42 : f32 to vector<4x256xf32>
    %102 = arith.select %100, %98, %101 : vector<4x256xi1>, vector<4x256xf32>
    %103 = arith.truncf %102 : vector<4x256xf32> to vector<4x256xbf16>
    %c24 = arith.constant 24 : index
    %c0_43 = arith.constant 0 : index
    %104 = vector.load %arg5[%c24, %c0_43] : memref<100x256xbf16, #tpu.memory_space<vmem>>, vector<4x256xbf16>
    tpu.vector_store %arg5[%c24, %c0_43], %103 {strides = array<i32>} : memref<100x256xbf16, #tpu.memory_space<vmem>>, vector<4x256xbf16>,
    %c0_44 = arith.constant 0 : index
    %c112 = arith.constant 112 : index
    %105 = vector.load %arg4[%c0_44, %c112] : memref<4x512xf32, #tpu.memory_space<vmem>>, vector<4x256xf32>
    %106 = arith.truncf %105 : vector<4x256xf32> to vector<4x256xbf16>
    %c28 = arith.constant 28 : index
    %c0_45 = arith.constant 0 : index
    %107 = vector.load %arg5[%c28, %c0_45] : memref<100x256xbf16, #tpu.memory_space<vmem>>, vector<4x256xbf16>
    tpu.vector_store %arg5[%c28, %c0_45], %106 {strides = array<i32>} : memref<100x256xbf16, #tpu.memory_space<vmem>>, vector<4x256xbf16>,
    %c0_46 = arith.constant 0 : index
    %c113 = arith.constant 113 : index
    %108 = vector.load %arg4[%c0_46, %c113] : memref<4x512xf32, #tpu.memory_space<vmem>>, vector<4x256xf32>
    %cst_47 = arith.constant 0.000000e+00 : f32
    %109 = vector.shape_cast %50 : vector<1x256xi1> to vector<1x256xi1>
    %110 = vector.broadcast %109 : vector<1x256xi1> to vector<4x256xi1>
    %111 = vector.broadcast %cst_47 : f32 to vector<4x256xf32>
    %112 = arith.select %110, %108, %111 : vector<4x256xi1>, vector<4x256xf32>
    %113 = arith.truncf %112 : vector<4x256xf32> to vector<4x256xbf16>
    %c32 = arith.constant 32 : index
    %c0_48 = arith.constant 0 : index
    %114 = vector.load %arg5[%c32, %c0_48] : memref<100x256xbf16, #tpu.memory_space<vmem>>, vector<4x256xbf16>
    tpu.vector_store %arg5[%c32, %c0_48], %113 {strides = array<i32>} : memref<100x256xbf16, #tpu.memory_space<vmem>>, vector<4x256xbf16>,
    %c0_49 = arith.constant 0 : index
    %c114 = arith.constant 114 : index
    %115 = vector.load %arg4[%c0_49, %c114] : memref<4x512xf32, #tpu.memory_space<vmem>>, vector<4x256xf32>
    %cst_50 = arith.constant 0.000000e+00 : f32
    %116 = vector.shape_cast %59 : vector<1x256xi1> to vector<1x256xi1>
    %117 = vector.broadcast %116 : vector<1x256xi1> to vector<4x256xi1>
    %118 = vector.broadcast %cst_50 : f32 to vector<4x256xf32>
    %119 = arith.select %117, %115, %118 : vector<4x256xi1>, vector<4x256xf32>
    %120 = arith.truncf %119 : vector<4x256xf32> to vector<4x256xbf16>
    %c36 = arith.constant 36 : index
    %c0_51 = arith.constant 0 : index
    %121 = vector.load %arg5[%c36, %c0_51] : memref<100x256xbf16, #tpu.memory_space<vmem>>, vector<4x256xbf16>
    tpu.vector_store %arg5[%c36, %c0_51], %120 {strides = array<i32>} : memref<100x256xbf16, #tpu.memory_space<vmem>>, vector<4x256xbf16>,
    %c0_52 = arith.constant 0 : index
    %c126 = arith.constant 126 : index
    %122 = vector.load %arg4[%c0_52, %c126] : memref<4x512xf32, #tpu.memory_space<vmem>>, vector<4x256xf32>
    %cst_53 = arith.constant 0.000000e+00 : f32
    %123 = vector.shape_cast %32 : vector<1x256xi1> to vector<1x256xi1>
    %124 = vector.broadcast %123 : vector<1x256xi1> to vector<4x256xi1>
    %125 = vector.broadcast %cst_53 : f32 to vector<4x256xf32>
    %126 = arith.select %124, %122, %125 : vector<4x256xi1>, vector<4x256xf32>
    %127 = arith.truncf %126 : vector<4x256xf32> to vector<4x256xbf16>
    %c40 = arith.constant 40 : index
    %c0_54 = arith.constant 0 : index
    %128 = vector.load %arg5[%c40, %c0_54] : memref<100x256xbf16, #tpu.memory_space<vmem>>, vector<4x256xbf16>
    tpu.vector_store %arg5[%c40, %c0_54], %127 {strides = array<i32>} : memref<100x256xbf16, #tpu.memory_space<vmem>>, vector<4x256xbf16>,
    %c0_55 = arith.constant 0 : index
    %c127 = arith.constant 127 : index
    %129 = vector.load %arg4[%c0_55, %c127] : memref<4x512xf32, #tpu.memory_space<vmem>>, vector<4x256xf32>
    %cst_56 = arith.constant 0.000000e+00 : f32
    %130 = vector.shape_cast %41 : vector<1x256xi1> to vector<1x256xi1>
    %131 = vector.broadcast %130 : vector<1x256xi1> to vector<4x256xi1>
    %132 = vector.broadcast %cst_56 : f32 to vector<4x256xf32>
    %133 = arith.select %131, %129, %132 : vector<4x256xi1>, vector<4x256xf32>
    %134 = arith.truncf %133 : vector<4x256xf32> to vector<4x256xbf16>
    %c44 = arith.constant 44 : index
    %c0_57 = arith.constant 0 : index
    %135 = vector.load %arg5[%c44, %c0_57] : memref<100x256xbf16, #tpu.memory_space<vmem>>, vector<4x256xbf16>
    tpu.vector_store %arg5[%c44, %c0_57], %134 {strides = array<i32>} : memref<100x256xbf16, #tpu.memory_space<vmem>>, vector<4x256xbf16>,
    %c0_58 = arith.constant 0 : index
    %c128_59 = arith.constant 128 : index
    %136 = vector.load %arg4[%c0_58, %c128_59] : memref<4x512xf32, #tpu.memory_space<vmem>>, vector<4x256xf32>
    %137 = arith.truncf %136 : vector<4x256xf32> to vector<4x256xbf16>
    %c48 = arith.constant 48 : index
    %c0_60 = arith.constant 0 : index
    %138 = vector.load %arg5[%c48, %c0_60] : memref<100x256xbf16, #tpu.memory_space<vmem>>, vector<4x256xbf16>
    tpu.vector_store %arg5[%c48, %c0_60], %137 {strides = array<i32>} : memref<100x256xbf16, #tpu.memory_space<vmem>>, vector<4x256xbf16>,
    %c0_61 = arith.constant 0 : index
    %c129 = arith.constant 129 : index
    %139 = vector.load %arg4[%c0_61, %c129] : memref<4x512xf32, #tpu.memory_space<vmem>>, vector<4x256xf32>
    %cst_62 = arith.constant 0.000000e+00 : f32
    %140 = vector.shape_cast %50 : vector<1x256xi1> to vector<1x256xi1>
    %141 = vector.broadcast %140 : vector<1x256xi1> to vector<4x256xi1>
    %142 = vector.broadcast %cst_62 : f32 to vector<4x256xf32>
    %143 = arith.select %141, %139, %142 : vector<4x256xi1>, vector<4x256xf32>
    %144 = arith.truncf %143 : vector<4x256xf32> to vector<4x256xbf16>
    %c52 = arith.constant 52 : index
    %c0_63 = arith.constant 0 : index
    %145 = vector.load %arg5[%c52, %c0_63] : memref<100x256xbf16, #tpu.memory_space<vmem>>, vector<4x256xbf16>
    tpu.vector_store %arg5[%c52, %c0_63], %144 {strides = array<i32>} : memref<100x256xbf16, #tpu.memory_space<vmem>>, vector<4x256xbf16>,
    %c0_64 = arith.constant 0 : index
    %c130 = arith.constant 130 : index
    %146 = vector.load %arg4[%c0_64, %c130] : memref<4x512xf32, #tpu.memory_space<vmem>>, vector<4x256xf32>
    %cst_65 = arith.constant 0.000000e+00 : f32
    %147 = vector.shape_cast %59 : vector<1x256xi1> to vector<1x256xi1>
    %148 = vector.broadcast %147 : vector<1x256xi1> to vector<4x256xi1>
    %149 = vector.broadcast %cst_65 : f32 to vector<4x256xf32>
    %150 = arith.select %148, %146, %149 : vector<4x256xi1>, vector<4x256xf32>
    %151 = arith.truncf %150 : vector<4x256xf32> to vector<4x256xbf16>
    %c56 = arith.constant 56 : index
    %c0_66 = arith.constant 0 : index
    %152 = vector.load %arg5[%c56, %c0_66] : memref<100x256xbf16, #tpu.memory_space<vmem>>, vector<4x256xbf16>
    tpu.vector_store %arg5[%c56, %c0_66], %151 {strides = array<i32>} : memref<100x256xbf16, #tpu.memory_space<vmem>>, vector<4x256xbf16>,
    %c0_67 = arith.constant 0 : index
    %c142 = arith.constant 142 : index
    %153 = vector.load %arg4[%c0_67, %c142] : memref<4x512xf32, #tpu.memory_space<vmem>>, vector<4x256xf32>
    %cst_68 = arith.constant 0.000000e+00 : f32
    %154 = vector.shape_cast %32 : vector<1x256xi1> to vector<1x256xi1>
    %155 = vector.broadcast %154 : vector<1x256xi1> to vector<4x256xi1>
    %156 = vector.broadcast %cst_68 : f32 to vector<4x256xf32>
    %157 = arith.select %155, %153, %156 : vector<4x256xi1>, vector<4x256xf32>
    %158 = arith.truncf %157 : vector<4x256xf32> to vector<4x256xbf16>
    %c60 = arith.constant 60 : index
    %c0_69 = arith.constant 0 : index
    %159 = vector.load %arg5[%c60, %c0_69] : memref<100x256xbf16, #tpu.memory_space<vmem>>, vector<4x256xbf16>
    tpu.vector_store %arg5[%c60, %c0_69], %158 {strides = array<i32>} : memref<100x256xbf16, #tpu.memory_space<vmem>>, vector<4x256xbf16>,
    %c0_70 = arith.constant 0 : index
    %c143 = arith.constant 143 : index
    %160 = vector.load %arg4[%c0_70, %c143] : memref<4x512xf32, #tpu.memory_space<vmem>>, vector<4x256xf32>
    %cst_71 = arith.constant 0.000000e+00 : f32
    %161 = vector.shape_cast %41 : vector<1x256xi1> to vector<1x256xi1>
    %162 = vector.broadcast %161 : vector<1x256xi1> to vector<4x256xi1>
    %163 = vector.broadcast %cst_71 : f32 to vector<4x256xf32>
    %164 = arith.select %162, %160, %163 : vector<4x256xi1>, vector<4x256xf32>
    %165 = arith.truncf %164 : vector<4x256xf32> to vector<4x256xbf16>
    %c64 = arith.constant 64 : index
    %c0_72 = arith.constant 0 : index
    %166 = vector.load %arg5[%c64, %c0_72] : memref<100x256xbf16, #tpu.memory_space<vmem>>, vector<4x256xbf16>
    tpu.vector_store %arg5[%c64, %c0_72], %165 {strides = array<i32>} : memref<100x256xbf16, #tpu.memory_space<vmem>>, vector<4x256xbf16>,
    %c0_73 = arith.constant 0 : index
    %c144 = arith.constant 144 : index
    %167 = vector.load %arg4[%c0_73, %c144] : memref<4x512xf32, #tpu.memory_space<vmem>>, vector<4x256xf32>
    %168 = arith.truncf %167 : vector<4x256xf32> to vector<4x256xbf16>
    %c68 = arith.constant 68 : index
    %c0_74 = arith.constant 0 : index
    %169 = vector.load %arg5[%c68, %c0_74] : memref<100x256xbf16, #tpu.memory_space<vmem>>, vector<4x256xbf16>
    tpu.vector_store %arg5[%c68, %c0_74], %168 {strides = array<i32>} : memref<100x256xbf16, #tpu.memory_space<vmem>>, vector<4x256xbf16>,
    %c0_75 = arith.constant 0 : index
    %c145 = arith.constant 145 : index
    %170 = vector.load %arg4[%c0_75, %c145] : memref<4x512xf32, #tpu.memory_space<vmem>>, vector<4x256xf32>
    %cst_76 = arith.constant 0.000000e+00 : f32
    %171 = vector.shape_cast %50 : vector<1x256xi1> to vector<1x256xi1>
    %172 = vector.broadcast %171 : vector<1x256xi1> to vector<4x256xi1>
    %173 = vector.broadcast %cst_76 : f32 to vector<4x256xf32>
    %174 = arith.select %172, %170, %173 : vector<4x256xi1>, vector<4x256xf32>
    %175 = arith.truncf %174 : vector<4x256xf32> to vector<4x256xbf16>
    %c72 = arith.constant 72 : index
    %c0_77 = arith.constant 0 : index
    %176 = vector.load %arg5[%c72, %c0_77] : memref<100x256xbf16, #tpu.memory_space<vmem>>, vector<4x256xbf16>
    tpu.vector_store %arg5[%c72, %c0_77], %175 {strides = array<i32>} : memref<100x256xbf16, #tpu.memory_space<vmem>>, vector<4x256xbf16>,
    %c0_78 = arith.constant 0 : index
    %c146 = arith.constant 146 : index
    %177 = vector.load %arg4[%c0_78, %c146] : memref<4x512xf32, #tpu.memory_space<vmem>>, vector<4x256xf32>
    %cst_79 = arith.constant 0.000000e+00 : f32
    %178 = vector.shape_cast %59 : vector<1x256xi1> to vector<1x256xi1>
    %179 = vector.broadcast %178 : vector<1x256xi1> to vector<4x256xi1>
    %180 = vector.broadcast %cst_79 : f32 to vector<4x256xf32>
    %181 = arith.select %179, %177, %180 : vector<4x256xi1>, vector<4x256xf32>
    %182 = arith.truncf %181 : vector<4x256xf32> to vector<4x256xbf16>
    %c76 = arith.constant 76 : index
    %c0_80 = arith.constant 0 : index
    %183 = vector.load %arg5[%c76, %c0_80] : memref<100x256xbf16, #tpu.memory_space<vmem>>, vector<4x256xbf16>
    tpu.vector_store %arg5[%c76, %c0_80], %182 {strides = array<i32>} : memref<100x256xbf16, #tpu.memory_space<vmem>>, vector<4x256xbf16>,
    %c0_81 = arith.constant 0 : index
    %c158 = arith.constant 158 : index
    %184 = vector.load %arg4[%c0_81, %c158] : memref<4x512xf32, #tpu.memory_space<vmem>>, vector<4x256xf32>
    %cst_82 = arith.constant 0.000000e+00 : f32
    %185 = vector.shape_cast %32 : vector<1x256xi1> to vector<1x256xi1>
    %186 = vector.broadcast %185 : vector<1x256xi1> to vector<4x256xi1>
    %187 = vector.broadcast %cst_82 : f32 to vector<4x256xf32>
    %188 = arith.select %186, %184, %187 : vector<4x256xi1>, vector<4x256xf32>
    %189 = arith.truncf %188 : vector<4x256xf32> to vector<4x256xbf16>
    %c80 = arith.constant 80 : index
    %c0_83 = arith.constant 0 : index
    %190 = vector.load %arg5[%c80, %c0_83] : memref<100x256xbf16, #tpu.memory_space<vmem>>, vector<4x256xbf16>
    tpu.vector_store %arg5[%c80, %c0_83], %189 {strides = array<i32>} : memref<100x256xbf16, #tpu.memory_space<vmem>>, vector<4x256xbf16>,
    %c0_84 = arith.constant 0 : index
    %c159 = arith.constant 159 : index
    %191 = vector.load %arg4[%c0_84, %c159] : memref<4x512xf32, #tpu.memory_space<vmem>>, vector<4x256xf32>
    %cst_85 = arith.constant 0.000000e+00 : f32
    %192 = vector.shape_cast %41 : vector<1x256xi1> to vector<1x256xi1>
    %193 = vector.broadcast %192 : vector<1x256xi1> to vector<4x256xi1>
    %194 = vector.broadcast %cst_85 : f32 to vector<4x256xf32>
    %195 = arith.select %193, %191, %194 : vector<4x256xi1>, vector<4x256xf32>
    %196 = arith.truncf %195 : vector<4x256xf32> to vector<4x256xbf16>
    %c84 = arith.constant 84 : index
    %c0_86 = arith.constant 0 : index
    %197 = vector.load %arg5[%c84, %c0_86] : memref<100x256xbf16, #tpu.memory_space<vmem>>, vector<4x256xbf16>
    tpu.vector_store %arg5[%c84, %c0_86], %196 {strides = array<i32>} : memref<100x256xbf16, #tpu.memory_space<vmem>>, vector<4x256xbf16>,
    %c0_87 = arith.constant 0 : index
    %c160 = arith.constant 160 : index
    %198 = vector.load %arg4[%c0_87, %c160] : memref<4x512xf32, #tpu.memory_space<vmem>>, vector<4x256xf32>
    %199 = arith.truncf %198 : vector<4x256xf32> to vector<4x256xbf16>
    %c88 = arith.constant 88 : index
    %c0_88 = arith.constant 0 : index
    %200 = vector.load %arg5[%c88, %c0_88] : memref<100x256xbf16, #tpu.memory_space<vmem>>, vector<4x256xbf16>
    tpu.vector_store %arg5[%c88, %c0_88], %199 {strides = array<i32>} : memref<100x256xbf16, #tpu.memory_space<vmem>>, vector<4x256xbf16>,
    %c0_89 = arith.constant 0 : index
    %c161 = arith.constant 161 : index
    %201 = vector.load %arg4[%c0_89, %c161] : memref<4x512xf32, #tpu.memory_space<vmem>>, vector<4x256xf32>
    %cst_90 = arith.constant 0.000000e+00 : f32
    %202 = vector.shape_cast %50 : vector<1x256xi1> to vector<1x256xi1>
    %203 = vector.broadcast %202 : vector<1x256xi1> to vector<4x256xi1>
    %204 = vector.broadcast %cst_90 : f32 to vector<4x256xf32>
    %205 = arith.select %203, %201, %204 : vector<4x256xi1>, vector<4x256xf32>
    %206 = arith.truncf %205 : vector<4x256xf32> to vector<4x256xbf16>
    %c92 = arith.constant 92 : index
    %c0_91 = arith.constant 0 : index
    %207 = vector.load %arg5[%c92, %c0_91] : memref<100x256xbf16, #tpu.memory_space<vmem>>, vector<4x256xbf16>
    tpu.vector_store %arg5[%c92, %c0_91], %206 {strides = array<i32>} : memref<100x256xbf16, #tpu.memory_space<vmem>>, vector<4x256xbf16>,
    %c0_92 = arith.constant 0 : index
    %c162 = arith.constant 162 : index
    %208 = vector.load %arg4[%c0_92, %c162] : memref<4x512xf32, #tpu.memory_space<vmem>>, vector<4x256xf32>
    %cst_93 = arith.constant 0.000000e+00 : f32
    %209 = vector.shape_cast %59 : vector<1x256xi1> to vector<1x256xi1>
    %210 = vector.broadcast %209 : vector<1x256xi1> to vector<4x256xi1>
    %211 = vector.broadcast %cst_93 : f32 to vector<4x256xf32>
    %212 = arith.select %210, %208, %211 : vector<4x256xi1>, vector<4x256xf32>
    %213 = arith.truncf %212 : vector<4x256xf32> to vector<4x256xbf16>
    %c96_94 = arith.constant 96 : index
    %c0_95 = arith.constant 0 : index
    %214 = vector.load %arg5[%c96_94, %c0_95] : memref<100x256xbf16, #tpu.memory_space<vmem>>, vector<4x256xbf16>
    tpu.vector_store %arg5[%c96_94, %c0_95], %213 {strides = array<i32>} : memref<100x256xbf16, #tpu.memory_space<vmem>>, vector<4x256xbf16>,
    %c0_96 = arith.constant 0 : index
    %c0_97 = arith.constant 0 : index
    %215 = vector.load %arg2[%c0_96, %c0_97] : memref<12x100xbf16, #tpu.memory_space<vmem>>, vector<12x100xbf16>
    %c0_98 = arith.constant 0 : index
    %c0_99 = arith.constant 0 : index
    %216 = vector.load %arg5[%c0_98, %c0_99] : memref<100x256xbf16, #tpu.memory_space<vmem>>, vector<100x256xbf16>
    %cst_100 = arith.constant dense<0.000000e+00> : vector<12x256xf32>
    %217 = tpu.matmul %215, %216, %cst_100 {dimension_numbers = #tpu.dot_dimension_numbers<[1], [0], [0], [1], [0, 0, 1, 1], [], []>} : vector<12x100xbf16>, vector<100x256xbf16>, vector<12x256xf32> -> vector<12x256xf32>
    %c0_101 = arith.constant 0 : index
    %c0_102 = arith.constant 0 : index
    %c0_103 = arith.constant 0 : index
    %218 = vector.load %arg3[%c0_101, %c0_102, %c0_103] : memref<1x12x256xf32, #tpu.memory_space<vmem>>, vector<1x12x256xf32>
    %219 = vector.shape_cast %218 : vector<1x12x256xf32> to vector<12x256xf32>
    %220 = vector.shape_cast %217 : vector<12x256xf32> to vector<1x12x256xf32>
    tpu.vector_store %arg3[%c0_101, %c0_102, %c0_103], %220 {strides = array<i32>} : memref<1x12x256xf32, #tpu.memory_space<vmem>>, vector<1x12x256xf32>,
    return
  }
  func.func @transform_0(%arg0: i32) -> (i32, i32, i32) {
    %c0_i32 = arith.constant 0 : i32
    %c0_i32_0 = arith.constant 0 : i32
    %c0_i32_1 = arith.constant 0 : i32
    return %arg0, %c0_i32, %c0_i32_0 : i32, i32, i32
  }
  func.func @transform_1(%arg0: i32) -> (i32, i32) {
    %c0_i32 = arith.constant 0 : i32
    %c0_i32_0 = arith.constant 0 : i32
    %c0_i32_1 = arith.constant 0 : i32
    return %c0_i32, %c0_i32_0 : i32, i32
  }
  func.func @transform_2(%arg0: i32) -> (i32, i32, i32) {
    %c0_i32 = arith.constant 0 : i32
    %c0_i32_0 = arith.constant 0 : i32
    %c0_i32_1 = arith.constant 0 : i32
    return %arg0, %c0_i32, %c0_i32_0 : i32, i32, i32
  }
}

</mosaic_0001>

<llo_original>
// kernel: pyconv2d.1
$region0: #{pyconv2d.1}
  #allocation0 [shape = 'u32[]', space=smem, size = 0x4, offset = 0x4, fixed_abs, tag = 'smem constant byte address 0x4 - core index']
  #allocation1 [shape = 'u32[72,128]{1,0:T(1,128)}', space=vmem, size = 0x9000, scoped, tag = 'internal scratch']
  #allocation2 [shape = 'f32[4,512]{1,0:T(4,128)}', space=vmem, size = 0x2000, scoped, tag = 'scratch operand']
  #allocation3 [shape = 'bf16[100,256]{1,0:T(8,128)(2,1)}', space=vmem, size = 0xd000, scoped, tag = 'scratch operand']
  %s0 = inlined_call_operand.vmem [shape: f32[2,4,256], index: 0, kind: input, shape index: {}]
  %s1 = inlined_call_operand.vmem [shape: bf16[12,100], index: 1, kind: input, shape index: {}]
  %s2 = inlined_call_operand.vmem [shape: f32[2,12,256], index: 2, kind: output, shape index: {}]
  %s3 = sld [smem:[#allocation0]]
  $region41: #{pyconv2d.1} parent=0
    _
  %s5 = ssub.s32 1, %s3
  %s6 = scalar_select 0, %s5, %s3
  loop: start=0, step=1, limit=4
  $region2: #{pyconv2d.1} parent=0 // loop_pre_header
    _
  $region3: #{pyconv2d.1} parent=0 // loop_header
    %s8 = sphi 0, %s12
    %p9 = scmp.ge.s32.totalorder %s8, 4
    %s18 = sphi 0, %s20
    %s21 = sphi 0, %s18
    %s22 = sphi 0, %s21
    %s38 = sphi 0, %s22
    %s42 = sphi 0, %s42
    %s44 = sphi 0, %s42
    %s45 = sphi 0, %s44
    %s59 = sphi 0, %s45
    %s65 = sphi 0, %s67
    %s68 = sphi 0, %s65
    %s69 = sphi 0, %s68
    %s85 = sphi 0, %s69
  $region4: #{pyconv2d.1} parent=0 // loop_header_branch
    %11 = sbr.rel (%p9) target = $region8
  $region5: #{pyconv2d.1} parent=0 // loop_body
    %s13 = ssub.s32 %s8, 1
    %s14 = ssub.s32 %s8, 2
    %s15 = sadd.s32 %s8, 1
    %s16 = ssub.s32 %s8, %s15
    %p17 = scmp.eq.s32.totalorder %s16, 0
    %s19 = sadd.s32 %s18, 1
    %s20 = scalar_select %p17, %s18, %s19
    %p23 = pneg %p17
    %p24 = scmp.eq.s32.totalorder %s8, 1
    %p25 = por %p23, %p24
    %p26 = scmp.ne.s32.totalorder %s18, %s21
    %p27 = scmp.eq.s32.totalorder %s8, 0
    %p28 = por %p26, %p27
    %p29 = scmp.ne.s32.totalorder %s18, %s21
    %p30 = scmp.eq.s32.totalorder %s13, 1
    %p31 = por %p29, %p30
    %p32 = scmp.ne.s32.totalorder %s21, %s22
    %p33 = scmp.eq.s32.totalorder %s13, 0
    %p34 = por %p32, %p33
    %p35 = scmp.ne.s32.totalorder %s21, %s22
    %p36 = scmp.eq.s32.totalorder %s14, 1
    %p37 = por %p35, %p36
    %p39 = scmp.ne.s32.totalorder %s22, %s38
    %p40 = scmp.eq.s32.totalorder %s14, 0
    %p41 = por %p39, %p40
    %s43 = sadd.s32 %s42, 1
    %p46 = scmp.eq.s32.totalorder %s8, 1
    %p47 = scmp.ne.s32.totalorder %s42, %s44
    %p48 = scmp.eq.s32.totalorder %s8, 0
    %p49 = por %p47, %p48
    %p50 = scmp.ne.s32.totalorder %s42, %s44
    %p51 = scmp.eq.s32.totalorder %s13, 1
    %p52 = por %p50, %p51
    %p53 = scmp.ne.s32.totalorder %s44, %s45
    %p54 = scmp.eq.s32.totalorder %s13, 0
    %p55 = por %p53, %p54
    %p56 = scmp.ne.s32.totalorder %s44, %s45
    %p57 = scmp.eq.s32.totalorder %s14, 1
    %p58 = por %p56, %p57
    %p60 = scmp.ne.s32.totalorder %s45, %s59
    %p61 = scmp.eq.s32.totalorder %s14, 0
    %p62 = por %p60, %p61
    %s63 = ssub.s32 %s8, %s15
    %p64 = scmp.eq.s32.totalorder %s63, 0
    %s66 = sadd.s32 %s65, 1
    %s67 = scalar_select %p64, %s65, %s66
    %p70 = pneg %p64
    %p71 = scmp.eq.s32.totalorder %s8, 1
    %p72 = por %p70, %p71
    %p73 = scmp.ne.s32.totalorder %s65, %s68
    %p74 = scmp.eq.s32.totalorder %s8, 0
    %p75 = por %p73, %p74
    %p76 = scmp.ne.s32.totalorder %s65, %s68
    %p77 = scmp.eq.s32.totalorder %s13, 1
    %p78 = por %p76, %p77
    %p79 = scmp.ne.s32.totalorder %s68, %s69
    %p80 = scmp.eq.s32.totalorder %s13, 0
    %p81 = por %p79, %p80
    %p82 = scmp.ne.s32.totalorder %s68, %s69
    %p83 = scmp.eq.s32.totalorder %s14, 1
    %p84 = por %p82, %p83
    %p86 = scmp.ne.s32.totalorder %s69, %s85
    %p87 = scmp.eq.s32.totalorder %s14, 0
    %p88 = por %p86, %p87
    %p89 = scmp.le.s32.totalorder 1, %s8
    %p90 = scmp.lt.s32.totalorder %s8, 3
    %p91 = pnand %p89, %p90
    %p92 = pneg %p91
    // Predicated region
    $region9: #{pyconv2d.1} parent=5 // pred_check
      _
    $region10: #{pyconv2d.1} parent=5 // pred_check_branch
      %94 = sbr.rel (%p91) target = $region12
    $region11: #{pyconv2d.1} parent=5 // pred_region
      %s95 = ssub.s32 %s8, 1
      // Predicated region
      $region13: #{pyconv2d.1} parent=11 // pred_check
        %p96 = pneg %p55
      $region14: #{pyconv2d.1} parent=11 // pred_check_branch
        %98 = sbr.rel (%p96) target = $region16
      $region15: #{pyconv2d.1} parent=11 // pred_region
        _
      $region16: #{pyconv2d.1} parent=11 // pred_fallthru
        _
    $region12: #{pyconv2d.1} parent=5 // pred_fallthru
      _
    %p99 = scmp.lt.s32.totalorder %s8, 2
    // Predicated region
    $region17: #{pyconv2d.1} parent=5 // pred_check
      %p100 = pneg %p99
    $region18: #{pyconv2d.1} parent=5 // pred_check_branch
      %102 = sbr.rel (%p100) target = $region20
    $region19: #{pyconv2d.1} parent=5 // pred_region
      // Predicated region
      $region21: #{pyconv2d.1} parent=19 // pred_check
        %p103 = pneg %p28
      $region22: #{pyconv2d.1} parent=19 // pred_check_branch
        %105 = sbr.rel (%p103) target = $region24
      $region23: #{pyconv2d.1} parent=19 // pred_region
        %p106 = scmp.lt.s32.totalorder %s8, 1
        %s107 = scalar_select %p106, %s8, 1
        %s108 = smul.addr %s107, 2
        %s109 = smul.addr %s108, 4
        %s110 = scalar_lea.vmem %s0, %s109
      $region24: #{pyconv2d.1} parent=19 // pred_fallthru
        _
    $region20: #{pyconv2d.1} parent=5 // pred_fallthru
      _
    %p111 = scmp.le.s32.totalorder 1, %s8
    %p112 = scmp.lt.s32.totalorder %s8, 3
    %p113 = pnand %p111, %p112
    %p114 = pneg %p113
    // Predicated region
    $region25: #{pyconv2d.1} parent=5 // pred_check
      _
    $region26: #{pyconv2d.1} parent=5 // pred_check_branch
      %116 = sbr.rel (%p113) target = $region28
    $region27: #{pyconv2d.1} parent=5 // pred_region
      %s117 = ssub.s32 %s8, 1
      %p118 = scmp.lt.s32.totalorder %s13, 1
      %s119 = scalar_select %p118, %s13, 1
      %s120 = smul.addr %s119, 2
      %s121 = smul.addr %s120, 4
      %s122 = scalar_lea.vmem %s0, %s121
      %p123 = pneg %p34
      %p124 = pneg %p31
      %p125 = pneg %p55
      %p126 = pneg %p52
      %p127 = pneg %p81
      %p128 = pneg %p78
      %p129 = scmp.lt.s32.totalorder %s13, 1
      %s130 = scalar_select %p129, %s13, 1
      %s131 = smul.addr %s130, 4
      %s132 = smul.addr %s131, 8
      %s133 = scalar_lea.vmem %s2, %s132
      %p134 = scmp.lt.s32.totalorder %s13, 1
      %s135 = scalar_select %p134, %s13, 1
      %s136 = smul.addr %s135, 2
      %s137 = smul.addr %s136, 4
      %s138 = scalar_lea.vmem %s0, %s137
      %p139 = scmp.lt.s32.totalorder %s13, 1
      %s140 = scalar_select %p139, %s13, 1
      %s141 = smul.addr %s140, 4
      %s142 = smul.addr %s141, 8
      %s143 = scalar_lea.vmem %s2, %s142
      %145 = vst [vmem:[#allocation2] sm:$0xf] 0.0
      %146 = vst [vmem:[#allocation2 + $0xc] sm:$0xf] 0.0
      %v147 = vld [vmem:[%s138] sm:$0xff]
      %148 = vst [vmem:[#allocation2 + $0x4] sm:$0xff] %v147
      %v149 = vlaneseq
      %v150 = vand.u32 %v149, 127
      %v151 = vadd.s32 %v150, 128
      %vm152 = vcmp.lt.s32.totalorder %v150, 0
      %v153 = vsub.s32 0, %v150
      %v154 = vsel %vm152, %v153, %v150
      %v155 = vshrl.u32 %v154, 4
      %v156 = vand.u32 %v154, 15
      %v157 = vsub.s32 0, %v156
      %v158 = vsel %vm152, %v157, %v156
      %vm159 = vcmp.lt.s32.totalorder %v151, 0
      %v160 = vsub.s32 0, %v151
      %v161 = vsel %vm159, %v160, %v151
      %v162 = vshrl.u32 %v161, 4
      %v163 = vand.u32 %v161, 15
      %v164 = vsub.s32 0, %v163
      %v165 = vsel %vm159, %v164, %v163
      %vm166 = vcmp.ne.s32.totalorder %v158, 0
      %vm167 = vcmp.ne.s32.totalorder %v165, 0
      %vm168 = vcmp.lt.s32.totalorder %v158, 0
      %vm169 = vcmp.lt.s32.totalorder %v165, 0
      %vm170 = vmand %vm168, %vm166
      %vm171 = vmand %vm169, %vm167
      %v172 = vadd.s32 %v158, 16
      %v173 = vadd.s32 %v165, 16
      %v174 = vsel %vm170, %v172, %v158
      %v175 = vsel %vm171, %v173, %v165
      %v176 = vadd.s32 %v174, 4294967294
      %v177 = vadd.s32 %v175, 4294967294
      %vm178 = vcmp.ge.s32.totalorder %v176, 0
      %vm179 = vcmp.ge.s32.totalorder %v177, 0
      %vm180 = vcmp.lt.s32.totalorder %v176, 16
      %vm181 = vcmp.lt.s32.totalorder %v177, 16
      %vm182 = vmand %vm178, %vm180
      %vm183 = vmand %vm179, %vm181
      %v184 = vadd.s32 %v174, 4294967295
      %v185 = vadd.s32 %v175, 4294967295
      %vm186 = vcmp.ge.s32.totalorder %v184, 0
      %vm187 = vcmp.ge.s32.totalorder %v185, 0
      %vm188 = vcmp.lt.s32.totalorder %v184, 16
      %vm189 = vcmp.lt.s32.totalorder %v185, 16
      %vm190 = vmand %vm186, %vm188
      %vm191 = vmand %vm187, %vm189
      %v192 = vadd.s32 %v174, 1
      %v193 = vadd.s32 %v175, 1
      %vm194 = vcmp.ge.s32.totalorder %v192, 0
      %vm195 = vcmp.ge.s32.totalorder %v193, 0
      %vm196 = vcmp.lt.s32.totalorder %v192, 16
      %vm197 = vcmp.lt.s32.totalorder %v193, 16
      %vm198 = vmand %vm194, %vm196
      %vm199 = vmand %vm195, %vm197
      %v200 = vadd.s32 %v174, 2
      %v201 = vadd.s32 %v175, 2
      %vm202 = vcmp.ge.s32.totalorder %v200, 0
      %vm203 = vcmp.ge.s32.totalorder %v201, 0
      %vm204 = vcmp.lt.s32.totalorder %v200, 16
      %vm205 = vcmp.lt.s32.totalorder %v201, 16
      %vm206 = vmand %vm202, %vm204
      %vm207 = vmand %vm203, %vm205
      %v208 = vld [vmem:[#allocation2] sm:$0xff]
      %v209 = vld [vmem:[#allocation2 + $0x8] sm:$0xf]
      %v210 = vsel %vm182, 1, 0
      %v211 = vsel %vm183, 1, 0
      %vm212 = vcmp.eq.s32.totalorder %v210, 1
      %vm213 = vcmp.eq.s32.totalorder %v211, 1
      %216 = vst [vmem:[#allocation1] ss:$2 sm:$0xff] %v208
      %s217 = scalar_lea.vmem [#allocation1], 16
      %218 = vst [vmem:[%s217] ss:$2 sm:$0xff] %v209
      %v219 = vld.sshfl [vmem:[#allocation1] sm:$0xff pattern:$0x75316420]
      %v220 = vld.sshfl [vmem:[#allocation1 + $0x8] sm:$0xff pattern:$0x75316420]
      %v221 = vld.sshfl [vmem:[#allocation1 + $0x10] sm:$0xff pattern:$0x75316420]
      %222 = vrot.lane.b32.xlu0 %v219, 34
      %v223 = vpop.permute.xlu0 %222
      %224 = vrot.lane.b32.xlu0 %v220, 34
      %v225 = vpop.permute.xlu0 %224
      %226 = vrot.lane.b32.xlu0 %v221, 34
      %v227 = vpop.permute.xlu0 %226
      %vm228 = vcmask 277504
      %v229 = vsel %vm228, %v223, %v225
      %v230 = vsel %vm228, %v225, %v227
      %v233 = vsel %vm212, %v229, 0.0
      %v234 = vsel %vm213, %v230, 0.0
      %v235 = vpack.c.bf16 %v234, %v233
      %236 = vst [vmem:[#allocation3] sm:$0x33] %v235
      %v237 = vld [vmem:[#allocation2] sm:$0xff]
      %v238 = vld [vmem:[#allocation2 + $0x8] sm:$0xf]
      %v239 = vsel %vm190, 1, 0
      %v240 = vsel %vm191, 1, 0
      %vm241 = vcmp.eq.s32.totalorder %v239, 1
      %vm242 = vcmp.eq.s32.totalorder %v240, 1
      %245 = vst [vmem:[#allocation1] ss:$2 sm:$0xff] %v237
      %s246 = scalar_lea.vmem [#allocation1], 16
      %247 = vst [vmem:[%s246] ss:$2 sm:$0xff] %v238
      %v248 = vld.sshfl [vmem:[#allocation1] sm:$0xff pattern:$0x75316420]
      %v249 = vld.sshfl [vmem:[#allocation1 + $0x8] sm:$0xff pattern:$0x75316420]
      %v250 = vld.sshfl [vmem:[#allocation1 + $0x10] sm:$0xff pattern:$0x75316420]
      %251 = vrot.lane.b32.xlu0 %v248, 33
      %v252 = vpop.permute.xlu0 %251
      %253 = vrot.lane.b32.xlu0 %v249, 33
      %v254 = vpop.permute.xlu0 %253
      %255 = vrot.lane.b32.xlu0 %v250, 33
      %v256 = vpop.permute.xlu0 %255
      %vm257 = vcmask 269312
      %v258 = vsel %vm257, %v252, %v254
      %v259 = vsel %vm257, %v254, %v256
      %v262 = vsel %vm241, %v258, 0.0
      %v263 = vsel %vm242, %v259, 0.0
      %v264 = vpack.c.bf16 %v263, %v262
      %v266 = vrot.slane %v264, 6
      %268 = vst [vmem:[#allocation3] sm:$0xcc] %v266
      %v269 = vld [vmem:[#allocation2] sm:$0xff]
      %v270 = vld [vmem:[#allocation2 + $0x8] sm:$0xf]
      %273 = vst [vmem:[#allocation1] ss:$2 sm:$0xff] %v269
      %s274 = scalar_lea.vmem [#allocation1], 16
      %275 = vst [vmem:[%s274] ss:$2 sm:$0xff] %v270
      %v276 = vld.sshfl [vmem:[#allocation1] sm:$0xff pattern:$0x75316420]
      %v277 = vld.sshfl [vmem:[#allocation1 + $0x8] sm:$0xff pattern:$0x75316420]
      %v278 = vld.sshfl [vmem:[#allocation1 + $0x10] sm:$0xff pattern:$0x75316420]
      %v282 = vpack.c.bf16 %v277, %v276
      %v283 = vpack.c.bf16 %v278, %v278
      %286 = vrot.lane.b32.xlu0 %v282, 32
      %v287 = vpop.permute.xlu0 %286
      %288 = vrot.lane.b32.xlu0 %v283, 32
      %v289 = vpop.permute.xlu0 %288
      %v290 = vrot.slane %v287, 4
      %v291 = vrot.slane %v289, 4
      %vm292 = vcmask 1043456
      %v293 = vsel %vm292, %v290, %v291
      %vm294 = vcmask 261120
      %v295 = vsel %vm294, %v287, %v293
      %297 = vst [vmem:[#allocation3 + $0x8] sm:$0x33] %v295
      %v298 = vld [vmem:[#allocation2] sm:$0xff]
      %v299 = vld [vmem:[#allocation2 + $0x8] sm:$0xf]
      %v300 = vsel %vm198, 1, 0
      %v301 = vsel %vm199, 1, 0
      %vm302 = vcmp.eq.s32.totalorder %v300, 1
      %vm303 = vcmp.eq.s32.totalorder %v301, 1
      %306 = vst [vmem:[#allocation1] ss:$2 sm:$0xff] %v298
      %s307 = scalar_lea.vmem [#allocation1], 16
      %308 = vst [vmem:[%s307] ss:$2 sm:$0xff] %v299
      %v309 = vld.sshfl [vmem:[#allocation1] sm:$0xff pattern:$0x75316420]
      %v310 = vld.sshfl [vmem:[#allocation1 + $0x8] sm:$0xff pattern:$0x75316420]
      %v311 = vld.sshfl [vmem:[#allocation1 + $0x10] sm:$0xff pattern:$0x75316420]
      %312 = vrot.lane.b32.xlu0 %v309, 31
      %v313 = vpop.permute.xlu0 %312
      %314 = vrot.lane.b32.xlu0 %v310, 31
      %v315 = vpop.permute.xlu0 %314
      %316 = vrot.lane.b32.xlu0 %v311, 31
      %v317 = vpop.permute.xlu0 %316
      %vm318 = vcmask 252928
      %v319 = vsel %vm318, %v313, %v315
      %v320 = vsel %vm318, %v315, %v317
      %v323 = vsel %vm302, %v319, 0.0
      %v324 = vsel %vm303, %v320, 0.0
      %v325 = vpack.c.bf16 %v324, %v323
      %v327 = vrot.slane %v325, 6
      %329 = vst [vmem:[#allocation3 + $0x8] sm:$0xcc] %v327
      %v330 = vld [vmem:[#allocation2] sm:$0xff]
      %v331 = vld [vmem:[#allocation2 + $0x8] sm:$0xf]
      %v332 = vsel %vm206, 1, 0
      %v333 = vsel %vm207, 1, 0
      %vm334 = vcmp.eq.s32.totalorder %v332, 1
      %vm335 = vcmp.eq.s32.totalorder %v333, 1
      %338 = vst [vmem:[#allocation1] ss:$2 sm:$0xff] %v330
      %s339 = scalar_lea.vmem [#allocation1], 16
      %340 = vst [vmem:[%s339] ss:$2 sm:$0xff] %v331
      %v341 = vld.sshfl [vmem:[#allocation1] sm:$0xff pattern:$0x75316420]
      %v342 = vld.sshfl [vmem:[#allocation1 + $0x8] sm:$0xff pattern:$0x75316420]
      %v343 = vld.sshfl [vmem:[#allocation1 + $0x10] sm:$0xff pattern:$0x75316420]
      %344 = vrot.lane.b32.xlu0 %v341, 30
      %v345 = vpop.permute.xlu0 %344
      %346 = vrot.lane.b32.xlu0 %v342, 30
      %v347 = vpop.permute.xlu0 %346
      %348 = vrot.lane.b32.xlu0 %v343, 30
      %v349 = vpop.permute.xlu0 %348
      %vm350 = vcmask 244736
      %v351 = vsel %vm350, %v345, %v347
      %v352 = vsel %vm350, %v347, %v349
      %v355 = vsel %vm334, %v351, 0.0
      %v356 = vsel %vm335, %v352, 0.0
      %v357 = vpack.c.bf16 %v356, %v355
      %358 = vst [vmem:[#allocation3 + $0x10] sm:$0x33] %v357
      %v359 = vld [vmem:[#allocation2] sm:$0xff]
      %v360 = vld [vmem:[#allocation2 + $0x8] sm:$0xf]
      %363 = vst [vmem:[#allocation1] ss:$2 sm:$0xff] %v359
      %s364 = scalar_lea.vmem [#allocation1], 16
      %365 = vst [vmem:[%s364] ss:$2 sm:$0xff] %v360
      %v366 = vld.sshfl [vmem:[#allocation1] sm:$0xff pattern:$0x75316420]
      %v367 = vld.sshfl [vmem:[#allocation1 + $0x8] sm:$0xff pattern:$0x75316420]
      %v368 = vld.sshfl [vmem:[#allocation1 + $0x10] sm:$0xff pattern:$0x75316420]
      %369 = vrot.lane.b32.xlu0 %v366, 18
      %v370 = vpop.permute.xlu0 %369
      %371 = vrot.lane.b32.xlu0 %v367, 18
      %v372 = vpop.permute.xlu0 %371
      %373 = vrot.lane.b32.xlu0 %v368, 18
      %v374 = vpop.permute.xlu0 %373
      %vm375 = vcmask 146432
      %v376 = vsel %vm375, %v370, %v372
      %v377 = vsel %vm375, %v372, %v374
      %v380 = vsel %vm212, %v376, 0.0
      %v381 = vsel %vm213, %v377, 0.0
      %v382 = vpack.c.bf16 %v381, %v380
      %v384 = vrot.slane %v382, 6
      %386 = vst [vmem:[#allocation3 + $0x10] sm:$0xcc] %v384
      %v387 = vld [vmem:[#allocation2] sm:$0xff]
      %v388 = vld [vmem:[#allocation2 + $0x8] sm:$0xf]
      %391 = vst [vmem:[#allocation1] ss:$2 sm:$0xff] %v387
      %s392 = scalar_lea.vmem [#allocation1], 16
      %393 = vst [vmem:[%s392] ss:$2 sm:$0xff] %v388
      %v394 = vld.sshfl [vmem:[#allocation1] sm:$0xff pattern:$0x75316420]
      %v395 = vld.sshfl [vmem:[#allocation1 + $0x8] sm:$0xff pattern:$0x75316420]
      %v396 = vld.sshfl [vmem:[#allocation1 + $0x10] sm:$0xff pattern:$0x75316420]
      %397 = vrot.lane.b32.xlu0 %v394, 17
      %v398 = vpop.permute.xlu0 %397
      %399 = vrot.lane.b32.xlu0 %v395, 17
      %v400 = vpop.permute.xlu0 %399
      %401 = vrot.lane.b32.xlu0 %v396, 17
      %v402 = vpop.permute.xlu0 %401
      %vm403 = vcmask 138240
      %v404 = vsel %vm403, %v398, %v400
      %v405 = vsel %vm403, %v400, %v402
      %v408 = vsel %vm241, %v404, 0.0
      %v409 = vsel %vm242, %v405, 0.0
      %v410 = vpack.c.bf16 %v409, %v408
      %411 = vst [vmem:[#allocation3 + $0x18] sm:$0x33] %v410
      %v412 = vld [vmem:[#allocation2] sm:$0xff]
      %v413 = vld [vmem:[#allocation2 + $0x8] sm:$0xf]
      %416 = vst [vmem:[#allocation1] ss:$2 sm:$0xff] %v412
      %s417 = scalar_lea.vmem [#allocation1], 16
      %418 = vst [vmem:[%s417] ss:$2 sm:$0xff] %v413
      %v419 = vld.sshfl [vmem:[#allocation1] sm:$0xff pattern:$0x75316420]
      %v420 = vld.sshfl [vmem:[#allocation1 + $0x8] sm:$0xff pattern:$0x75316420]
      %v421 = vld.sshfl [vmem:[#allocation1 + $0x10] sm:$0xff pattern:$0x75316420]
      %v425 = vpack.c.bf16 %v420, %v419
      %v426 = vpack.c.bf16 %v421, %v421
      %v429 = vrot.slane %v425, 6
      %v430 = vrot.slane %v426, 6
      %431 = vrot.lane.b32.xlu0 %v429, 16
      %v432 = vpop.permute.xlu0 %431
      %433 = vrot.lane.b32.xlu0 %v430, 16
      %v434 = vpop.permute.xlu0 %433
      %v435 = vrot.slane %v432, 4
      %v436 = vrot.slane %v434, 4
      %v437 = vsel %vm292, %v435, %v436
      %vm438 = vcmask 130048
      %v439 = vsel %vm438, %v432, %v437
      %441 = vst [vmem:[#allocation3 + $0x18] sm:$0xcc] %v439
      %v442 = vld [vmem:[#allocation2] sm:$0xff]
      %v443 = vld [vmem:[#allocation2 + $0x8] sm:$0xf]
      %446 = vst [vmem:[#allocation1] ss:$2 sm:$0xff] %v442
      %s447 = scalar_lea.vmem [#allocation1], 16
      %448 = vst [vmem:[%s447] ss:$2 sm:$0xff] %v443
      %v449 = vld.sshfl [vmem:[#allocation1] sm:$0xff pattern:$0x75316420]
      %v450 = vld.sshfl [vmem:[#allocation1 + $0x8] sm:$0xff pattern:$0x75316420]
      %v451 = vld.sshfl [vmem:[#allocation1 + $0x10] sm:$0xff pattern:$0x75316420]
      %452 = vrot.lane.b32.xlu0 %v449, 15
      %v453 = vpop.permute.xlu0 %452
      %454 = vrot.lane.b32.xlu0 %v450, 15
      %v455 = vpop.permute.xlu0 %454
      %456 = vrot.lane.b32.xlu0 %v451, 15
      %v457 = vpop.permute.xlu0 %456
      %vm458 = vcmask 121856
      %v459 = vsel %vm458, %v453, %v455
      %v460 = vsel %vm458, %v455, %v457
      %v463 = vsel %vm302, %v459, 0.0
      %v464 = vsel %vm303, %v460, 0.0
      %v465 = vpack.c.bf16 %v464, %v463
      %466 = vst [vmem:[#allocation3 + $0x20] sm:$0x33] %v465
      %v467 = vld [vmem:[#allocation2] sm:$0xff]
      %v468 = vld [vmem:[#allocation2 + $0x8] sm:$0xf]
      %471 = vst [vmem:[#allocation1] ss:$2 sm:$0xff] %v467
      %s472 = scalar_lea.vmem [#allocation1], 16
      %473 = vst [vmem:[%s472] ss:$2 sm:$0xff] %v468
      %v474 = vld.sshfl [vmem:[#allocation1] sm:$0xff pattern:$0x75316420]
      %v475 = vld.sshfl [vmem:[#allocation1 + $0x8] sm:$0xff pattern:$0x75316420]
      %v476 = vld.sshfl [vmem:[#allocation1 + $0x10] sm:$0xff pattern:$0x75316420]
      %477 = vrot.lane.b32.xlu0 %v474, 14
      %v478 = vpop.permute.xlu0 %477
      %479 = vrot.lane.b32.xlu0 %v475, 14
      %v480 = vpop.permute.xlu0 %479
      %481 = vrot.lane.b32.xlu0 %v476, 14
      %v482 = vpop.permute.xlu0 %481
      %vm483 = vcmask 113664
      %v484 = vsel %vm483, %v478, %v480
      %v485 = vsel %vm483, %v480, %v482
      %v488 = vsel %vm334, %v484, 0.0
      %v489 = vsel %vm335, %v485, 0.0
      %v490 = vpack.c.bf16 %v489, %v488
      %v492 = vrot.slane %v490, 6
      %494 = vst [vmem:[#allocation3 + $0x20] sm:$0xcc] %v492
      %v495 = vld [vmem:[#allocation2] sm:$0xff]
      %v496 = vld [vmem:[#allocation2 + $0x8] sm:$0xf]
      %499 = vst [vmem:[#allocation1] ss:$2 sm:$0xff] %v495
      %s500 = scalar_lea.vmem [#allocation1], 16
      %501 = vst [vmem:[%s500] ss:$2 sm:$0xff] %v496
      %v502 = vld.sshfl [vmem:[#allocation1] sm:$0xff pattern:$0x75316420]
      %v503 = vld.sshfl [vmem:[#allocation1 + $0x8] sm:$0xff pattern:$0x75316420]
      %v504 = vld.sshfl [vmem:[#allocation1 + $0x10] sm:$0xff pattern:$0x75316420]
      %505 = vrot.lane.b32.xlu0 %v502, 2
      %v506 = vpop.permute.xlu0 %505
      %507 = vrot.lane.b32.xlu0 %v503, 2
      %v508 = vpop.permute.xlu0 %507
      %509 = vrot.lane.b32.xlu0 %v504, 2
      %v510 = vpop.permute.xlu0 %509
      %vm511 = vcmask 15360
      %v512 = vsel %vm511, %v506, %v508
      %v513 = vsel %vm511, %v508, %v510
      %v516 = vsel %vm212, %v512, 0.0
      %v517 = vsel %vm213, %v513, 0.0
      %v518 = vpack.c.bf16 %v517, %v516
      %519 = vst [vmem:[#allocation3 + $0x28] sm:$0x33] %v518
      %v520 = vld [vmem:[#allocation2] sm:$0xff]
      %v521 = vld [vmem:[#allocation2 + $0x8] sm:$0xf]
      %524 = vst [vmem:[#allocation1] ss:$2 sm:$0xff] %v520
      %s525 = scalar_lea.vmem [#allocation1], 16
      %526 = vst [vmem:[%s525] ss:$2 sm:$0xff] %v521
      %v527 = vld.sshfl [vmem:[#allocation1] sm:$0xff pattern:$0x75316420]
      %v528 = vld.sshfl [vmem:[#allocation1 + $0x8] sm:$0xff pattern:$0x75316420]
      %v529 = vld.sshfl [vmem:[#allocation1 + $0x10] sm:$0xff pattern:$0x75316420]
      %530 = vrot.lane.b32.xlu0 %v527, 1
      %v531 = vpop.permute.xlu0 %530
      %532 = vrot.lane.b32.xlu0 %v528, 1
      %v533 = vpop.permute.xlu0 %532
      %534 = vrot.lane.b32.xlu0 %v529, 1
      %v535 = vpop.permute.xlu0 %534
      %vm536 = vcmask 7168
      %v537 = vsel %vm536, %v531, %v533
      %v538 = vsel %vm536, %v533, %v535
      %v541 = vsel %vm241, %v537, 0.0
      %v542 = vsel %vm242, %v538, 0.0
      %v543 = vpack.c.bf16 %v542, %v541
      %v545 = vrot.slane %v543, 6
      %547 = vst [vmem:[#allocation3 + $0x28] sm:$0xcc] %v545
      %v548 = vld [vmem:[#allocation2 + $0x4] sm:$0xff]
      %550 = vst [vmem:[#allocation1] ss:$2 sm:$0xff] %v548
      %v551 = vld.sshfl [vmem:[#allocation1] sm:$0xff pattern:$0x75316420]
      %v552 = vld.sshfl [vmem:[#allocation1 + $0x8] sm:$0xff pattern:$0x75316420]
      %v555 = vpack.c.bf16 %v552, %v551
      %556 = vst [vmem:[#allocation3 + $0x30] sm:$0x33] %v555
      %v557 = vld [vmem:[#allocation2 + $0x4] sm:$0xff]
      %v558 = vld [vmem:[#allocation2 + $0xc] sm:$0xf]
      %561 = vst [vmem:[#allocation1] ss:$2 sm:$0xff] %v557
      %s562 = scalar_lea.vmem [#allocation1], 16
      %563 = vst [vmem:[%s562] ss:$2 sm:$0xff] %v558
      %v564 = vld.sshfl [vmem:[#allocation1] sm:$0xff pattern:$0x75316420]
      %v565 = vld.sshfl [vmem:[#allocation1 + $0x8] sm:$0xff pattern:$0x75316420]
      %v566 = vld.sshfl [vmem:[#allocation1 + $0x10] sm:$0xff pattern:$0x75316420]
      %567 = vrot.lane.b32.xlu0 %v564, 127
      %v568 = vpop.permute.xlu0 %567
      %569 = vrot.lane.b32.xlu0 %v565, 127
      %v570 = vpop.permute.xlu0 %569
      %571 = vrot.lane.b32.xlu0 %v566, 127
      %v572 = vpop.permute.xlu0 %571
      %vm573 = vcmask 1039360
      %v574 = vsel %vm573, %v568, %v570
      %v575 = vsel %vm573, %v570, %v572
      %v578 = vsel %vm302, %v574, 0.0
      %v579 = vsel %vm303, %v575, 0.0
      %v580 = vpack.c.bf16 %v579, %v578
      %v582 = vrot.slane %v580, 6
      %584 = vst [vmem:[#allocation3 + $0x30] sm:$0xcc] %v582
      %v585 = vld [vmem:[#allocation2 + $0x4] sm:$0xff]
      %v586 = vld [vmem:[#allocation2 + $0xc] sm:$0xf]
      %589 = vst [vmem:[#allocation1] ss:$2 sm:$0xff] %v585
      %s590 = scalar_lea.vmem [#allocation1], 16
      %591 = vst [vmem:[%s590] ss:$2 sm:$0xff] %v586
      %v592 = vld.sshfl [vmem:[#allocation1] sm:$0xff pattern:$0x75316420]
      %v593 = vld.sshfl [vmem:[#allocation1 + $0x8] sm:$0xff pattern:$0x75316420]
      %v594 = vld.sshfl [vmem:[#allocation1 + $0x10] sm:$0xff pattern:$0x75316420]
      %595 = vrot.lane.b32.xlu0 %v592, 126
      %v596 = vpop.permute.xlu0 %595
      %597 = vrot.lane.b32.xlu0 %v593, 126
      %v598 = vpop.permute.xlu0 %597
      %599 = vrot.lane.b32.xlu0 %v594, 126
      %v600 = vpop.permute.xlu0 %599
      %vm601 = vcmask 1031168
      %v602 = vsel %vm601, %v596, %v598
      %v603 = vsel %vm601, %v598, %v600
      %v606 = vsel %vm334, %v602, 0.0
      %v607 = vsel %vm335, %v603, 0.0
      %v608 = vpack.c.bf16 %v607, %v606
      %609 = vst [vmem:[#allocation3 + $0x38] sm:$0x33] %v608
      %v610 = vld [vmem:[#allocation2 + $0x4] sm:$0xff]
      %v611 = vld [vmem:[#allocation2 + $0xc] sm:$0xf]
      %614 = vst [vmem:[#allocation1] ss:$2 sm:$0xff] %v610
      %s615 = scalar_lea.vmem [#allocation1], 16
      %616 = vst [vmem:[%s615] ss:$2 sm:$0xff] %v611
      %v617 = vld.sshfl [vmem:[#allocation1] sm:$0xff pattern:$0x75316420]
      %v618 = vld.sshfl [vmem:[#allocation1 + $0x8] sm:$0xff pattern:$0x75316420]
      %v619 = vld.sshfl [vmem:[#allocation1 + $0x10] sm:$0xff pattern:$0x75316420]
      %620 = vrot.lane.b32.xlu0 %v617, 114
      %v621 = vpop.permute.xlu0 %620
      %622 = vrot.lane.b32.xlu0 %v618, 114
      %v623 = vpop.permute.xlu0 %622
      %624 = vrot.lane.b32.xlu0 %v619, 114
      %v625 = vpop.permute.xlu0 %624
      %vm626 = vcmask 932864
      %v627 = vsel %vm626, %v621, %v623
      %v628 = vsel %vm626, %v623, %v625
      %v631 = vsel %vm212, %v627, 0.0
      %v632 = vsel %vm213, %v628, 0.0
      %v633 = vpack.c.bf16 %v632, %v631
      %v635 = vrot.slane %v633, 6
      %637 = vst [vmem:[#allocation3 + $0x38] sm:$0xcc] %v635
      %v638 = vld [vmem:[#allocation2 + $0x4] sm:$0xff]
      %v639 = vld [vmem:[#allocation2 + $0xc] sm:$0xf]
      %642 = vst [vmem:[#allocation1] ss:$2 sm:$0xff] %v638
      %s643 = scalar_lea.vmem [#allocation1], 16
      %644 = vst [vmem:[%s643] ss:$2 sm:$0xff] %v639
      %v645 = vld.sshfl [vmem:[#allocation1] sm:$0xff pattern:$0x75316420]
      %v646 = vld.sshfl [vmem:[#allocation1 + $0x8] sm:$0xff pattern:$0x75316420]
      %v647 = vld.sshfl [vmem:[#allocation1 + $0x10] sm:$0xff pattern:$0x75316420]
      %648 = vrot.lane.b32.xlu0 %v645, 113
      %v649 = vpop.permute.xlu0 %648
      %650 = vrot.lane.b32.xlu0 %v646, 113
      %v651 = vpop.permute.xlu0 %650
      %652 = vrot.lane.b32.xlu0 %v647, 113
      %v653 = vpop.permute.xlu0 %652
      %vm654 = vcmask 924672
      %v655 = vsel %vm654, %v649, %v651
      %v656 = vsel %vm654, %v651, %v653
      %v659 = vsel %vm241, %v655, 0.0
      %v660 = vsel %vm242, %v656, 0.0
      %v661 = vpack.c.bf16 %v660, %v659
      %662 = vst [vmem:[#allocation3 + $0x40] sm:$0x33] %v661
      %v663 = vld [vmem:[#allocation2 + $0x4] sm:$0xff]
      %v664 = vld [vmem:[#allocation2 + $0xc] sm:$0xf]
      %667 = vst [vmem:[#allocation1] ss:$2 sm:$0xff] %v663
      %s668 = scalar_lea.vmem [#allocation1], 16
      %669 = vst [vmem:[%s668] ss:$2 sm:$0xff] %v664
      %v670 = vld.sshfl [vmem:[#allocation1] sm:$0xff pattern:$0x75316420]
      %v671 = vld.sshfl [vmem:[#allocation1 + $0x8] sm:$0xff pattern:$0x75316420]
      %v672 = vld.sshfl [vmem:[#allocation1 + $0x10] sm:$0xff pattern:$0x75316420]
      %v676 = vpack.c.bf16 %v671, %v670
      %v677 = vpack.c.bf16 %v672, %v672
      %v680 = vrot.slane %v676, 6
      %v681 = vrot.slane %v677, 6
      %682 = vrot.lane.b32.xlu0 %v680, 112
      %v683 = vpop.permute.xlu0 %682
      %684 = vrot.lane.b32.xlu0 %v681, 112
      %v685 = vpop.permute.xlu0 %684
      %v686 = vrot.slane %v683, 4
      %v687 = vrot.slane %v685, 4
      %v688 = vsel %vm292, %v686, %v687
      %vm689 = vcmask 916480
      %v690 = vsel %vm689, %v683, %v688
      %692 = vst [vmem:[#allocation3 + $0x40] sm:$0xcc] %v690
      %v693 = vld [vmem:[#allocation2 + $0x4] sm:$0xff]
      %v694 = vld [vmem:[#allocation2 + $0xc] sm:$0xf]
      %697 = vst [vmem:[#allocation1] ss:$2 sm:$0xff] %v693
      %s698 = scalar_lea.vmem [#allocation1], 16
      %699 = vst [vmem:[%s698] ss:$2 sm:$0xff] %v694
      %v700 = vld.sshfl [vmem:[#allocation1] sm:$0xff pattern:$0x75316420]
      %v701 = vld.sshfl [vmem:[#allocation1 + $0x8] sm:$0xff pattern:$0x75316420]
      %v702 = vld.sshfl [vmem:[#allocation1 + $0x10] sm:$0xff pattern:$0x75316420]
      %703 = vrot.lane.b32.xlu0 %v700, 111
      %v704 = vpop.permute.xlu0 %703
      %705 = vrot.lane.b32.xlu0 %v701, 111
      %v706 = vpop.permute.xlu0 %705
      %707 = vrot.lane.b32.xlu0 %v702, 111
      %v708 = vpop.permute.xlu0 %707
      %vm709 = vcmask 908288
      %v710 = vsel %vm709, %v704, %v706
      %v711 = vsel %vm709, %v706, %v708
      %v714 = vsel %vm302, %v710, 0.0
      %v715 = vsel %vm303, %v711, 0.0
      %v716 = vpack.c.bf16 %v715, %v714
      %717 = vst [vmem:[#allocation3 + $0x48] sm:$0x33] %v716
      %v718 = vld [vmem:[#allocation2 + $0x4] sm:$0xff]
      %v719 = vld [vmem:[#allocation2 + $0xc] sm:$0xf]
      %722 = vst [vmem:[#allocation1] ss:$2 sm:$0xff] %v718
      %s723 = scalar_lea.vmem [#allocation1], 16
      %724 = vst [vmem:[%s723] ss:$2 sm:$0xff] %v719
      %v725 = vld.sshfl [vmem:[#allocation1] sm:$0xff pattern:$0x75316420]
      %v726 = vld.sshfl [vmem:[#allocation1 + $0x8] sm:$0xff pattern:$0x75316420]
      %v727 = vld.sshfl [vmem:[#allocation1 + $0x10] sm:$0xff pattern:$0x75316420]
      %728 = vrot.lane.b32.xlu0 %v725, 110
      %v729 = vpop.permute.xlu0 %728
      %730 = vrot.lane.b32.xlu0 %v726, 110
      %v731 = vpop.permute.xlu0 %730
      %732 = vrot.lane.b32.xlu0 %v727, 110
      %v733 = vpop.permute.xlu0 %732
      %vm734 = vcmask 900096
      %v735 = vsel %vm734, %v729, %v731
      %v736 = vsel %vm734, %v731, %v733
      %v739 = vsel %vm334, %v735, 0.0
      %v740 = vsel %vm335, %v736, 0.0
      %v741 = vpack.c.bf16 %v740, %v739
      %v743 = vrot.slane %v741, 6
      %745 = vst [vmem:[#allocation3 + $0x48] sm:$0xcc] %v743
      %v746 = vld [vmem:[#allocation2 + $0x4] sm:$0xff]
      %v747 = vld [vmem:[#allocation2 + $0xc] sm:$0xf]
      %750 = vst [vmem:[#allocation1] ss:$2 sm:$0xff] %v746
      %s751 = scalar_lea.vmem [#allocation1], 16
      %752 = vst [vmem:[%s751] ss:$2 sm:$0xff] %v747
      %v753 = vld.sshfl [vmem:[#allocation1] sm:$0xff pattern:$0x75316420]
      %v754 = vld.sshfl [vmem:[#allocation1 + $0x8] sm:$0xff pattern:$0x75316420]
      %v755 = vld.sshfl [vmem:[#allocation1 + $0x10] sm:$0xff pattern:$0x75316420]
      %756 = vrot.lane.b32.xlu0 %v753, 98
      %v757 = vpop.permute.xlu0 %756
      %758 = vrot.lane.b32.xlu0 %v754, 98
      %v759 = vpop.permute.xlu0 %758
      %760 = vrot.lane.b32.xlu0 %v755, 98
      %v761 = vpop.permute.xlu0 %760
      %vm762 = vcmask 801792
      %v763 = vsel %vm762, %v757, %v759
      %v764 = vsel %vm762, %v759, %v761
      %v767 = vsel %vm212, %v763, 0.0
      %v768 = vsel %vm213, %v764, 0.0
      %v769 = vpack.c.bf16 %v768, %v767
      %770 = vst [vmem:[#allocation3 + $0x50] sm:$0x33] %v769
      %v771 = vld [vmem:[#allocation2 + $0x4] sm:$0xff]
      %v772 = vld [vmem:[#allocation2 + $0xc] sm:$0xf]
      %775 = vst [vmem:[#allocation1] ss:$2 sm:$0xff] %v771
      %s776 = scalar_lea.vmem [#allocation1], 16
      %777 = vst [vmem:[%s776] ss:$2 sm:$0xff] %v772
      %v778 = vld.sshfl [vmem:[#allocation1] sm:$0xff pattern:$0x75316420]
      %v779 = vld.sshfl [vmem:[#allocation1 + $0x8] sm:$0xff pattern:$0x75316420]
      %v780 = vld.sshfl [vmem:[#allocation1 + $0x10] sm:$0xff pattern:$0x75316420]
      %781 = vrot.lane.b32.xlu0 %v778, 97
      %v782 = vpop.permute.xlu0 %781
      %783 = vrot.lane.b32.xlu0 %v779, 97
      %v784 = vpop.permute.xlu0 %783
      %785 = vrot.lane.b32.xlu0 %v780, 97
      %v786 = vpop.permute.xlu0 %785
      %vm787 = vcmask 793600
      %v788 = vsel %vm787, %v782, %v784
      %v789 = vsel %vm787, %v784, %v786
      %v792 = vsel %vm241, %v788, 0.0
      %v793 = vsel %vm242, %v789, 0.0
      %v794 = vpack.c.bf16 %v793, %v792
      %v796 = vrot.slane %v794, 6
      %798 = vst [vmem:[#allocation3 + $0x50] sm:$0xcc] %v796
      %v799 = vld [vmem:[#allocation2 + $0x4] sm:$0xff]
      %v800 = vld [vmem:[#allocation2 + $0xc] sm:$0xf]
      %803 = vst [vmem:[#allocation1] ss:$2 sm:$0xff] %v799
      %s804 = scalar_lea.vmem [#allocation1], 16
      %805 = vst [vmem:[%s804] ss:$2 sm:$0xff] %v800
      %v806 = vld.sshfl [vmem:[#allocation1] sm:$0xff pattern:$0x75316420]
      %v807 = vld.sshfl [vmem:[#allocation1 + $0x8] sm:$0xff pattern:$0x75316420]
      %v808 = vld.sshfl [vmem:[#allocation1 + $0x10] sm:$0xff pattern:$0x75316420]
      %v812 = vpack.c.bf16 %v807, %v806
      %v813 = vpack.c.bf16 %v808, %v808
      %816 = vrot.lane.b32.xlu0 %v812, 96
      %v817 = vpop.permute.xlu0 %816
      %818 = vrot.lane.b32.xlu0 %v813, 96
      %v819 = vpop.permute.xlu0 %818
      %v820 = vrot.slane %v817, 4
      %v821 = vrot.slane %v819, 4
      %v822 = vsel %vm292, %v820, %v821
      %vm823 = vcmask 785408
      %v824 = vsel %vm823, %v817, %v822
      %826 = vst [vmem:[#allocation3 + $0x58] sm:$0x33] %v824
      %v827 = vld [vmem:[#allocation2 + $0x4] sm:$0xff]
      %v828 = vld [vmem:[#allocation2 + $0xc] sm:$0xf]
      %831 = vst [vmem:[#allocation1] ss:$2 sm:$0xff] %v827
      %s832 = scalar_lea.vmem [#allocation1], 16
      %833 = vst [vmem:[%s832] ss:$2 sm:$0xff] %v828
      %v834 = vld.sshfl [vmem:[#allocation1] sm:$0xff pattern:$0x75316420]
      %v835 = vld.sshfl [vmem:[#allocation1 + $0x8] sm:$0xff pattern:$0x75316420]
      %v836 = vld.sshfl [vmem:[#allocation1 + $0x10] sm:$0xff pattern:$0x75316420]
      %837 = vrot.lane.b32.xlu0 %v834, 95
      %v838 = vpop.permute.xlu0 %837
      %839 = vrot.lane.b32.xlu0 %v835, 95
      %v840 = vpop.permute.xlu0 %839
      %841 = vrot.lane.b32.xlu0 %v836, 95
      %v842 = vpop.permute.xlu0 %841
      %vm843 = vcmask 777216
      %v844 = vsel %vm843, %v838, %v840
      %v845 = vsel %vm843, %v840, %v842
      %v848 = vsel %vm302, %v844, 0.0
      %v849 = vsel %vm303, %v845, 0.0
      %v850 = vpack.c.bf16 %v849, %v848
      %v852 = vrot.slane %v850, 6
      %854 = vst [vmem:[#allocation3 + $0x58] sm:$0xcc] %v852
      %v855 = vld [vmem:[#allocation2 + $0x4] sm:$0xff]
      %v856 = vld [vmem:[#allocation2 + $0xc] sm:$0xf]
      %859 = vst [vmem:[#allocation1] ss:$2 sm:$0xff] %v855
      %s860 = scalar_lea.vmem [#allocation1], 16
      %861 = vst [vmem:[%s860] ss:$2 sm:$0xff] %v856
      %v862 = vld.sshfl [vmem:[#allocation1] sm:$0xff pattern:$0x75316420]
      %v863 = vld.sshfl [vmem:[#allocation1 + $0x8] sm:$0xff pattern:$0x75316420]
      %v864 = vld.sshfl [vmem:[#allocation1 + $0x10] sm:$0xff pattern:$0x75316420]
      %865 = vrot.lane.b32.xlu0 %v862, 94
      %v866 = vpop.permute.xlu0 %865
      %867 = vrot.lane.b32.xlu0 %v863, 94
      %v868 = vpop.permute.xlu0 %867
      %869 = vrot.lane.b32.xlu0 %v864, 94
      %v870 = vpop.permute.xlu0 %869
      %vm871 = vcmask 769024
      %v872 = vsel %vm871, %v866, %v868
      %v873 = vsel %vm871, %v868, %v870
      %v876 = vsel %vm334, %v872, 0.0
      %v877 = vsel %vm335, %v873, 0.0
      %v878 = vpack.c.bf16 %v877, %v876
      %879 = vst [vmem:[#allocation3 + $0x60] sm:$0x33] %v878
      %v880 = vld [vmem:[%s1] sm:$0xf]
      %v881 = vld [vmem:[%s1 + $0x4] sm:$0x3]
      %v882 = vld [vmem:[#allocation3] sm:$0xff]
      %v883 = vld [vmem:[#allocation3 + $0x8] sm:$0xff]
      %v884 = vld [vmem:[#allocation3 + $0x10] sm:$0xff]
      %v885 = vld [vmem:[#allocation3 + $0x18] sm:$0xff]
      %v886 = vld [vmem:[#allocation3 + $0x20] sm:$0xff]
      %v887 = vld [vmem:[#allocation3 + $0x28] sm:$0xff]
      %v888 = vld [vmem:[#allocation3 + $0x30] sm:$0xff]
      %v889 = vld [vmem:[#allocation3 + $0x38] sm:$0xff]
      %v890 = vld [vmem:[#allocation3 + $0x40] sm:$0xff]
      %v891 = vld [vmem:[#allocation3 + $0x48] sm:$0xff]
      %v892 = vld [vmem:[#allocation3 + $0x50] sm:$0xff]
      %v893 = vld [vmem:[#allocation3 + $0x58] sm:$0xff]
      %v894 = vld [vmem:[#allocation3 + $0x60] sm:$0x33]
      %v897 = vunpack.c.l.b16 %v880
      %v898 = vunpack.c.l.b16 %v881
      %v899 = vpack.c.b16 %v898, %v897
      %v913 = vunpack.c.l.b16 %v882
      %v914 = vunpack.c.h.b16 %v882
      %v915 = vunpack.c.l.b16 %v883
      %v916 = vunpack.c.h.b16 %v883
      %v917 = vunpack.c.l.b16 %v884
      %v918 = vunpack.c.h.b16 %v884
      %v919 = vunpack.c.l.b16 %v885
      %v920 = vunpack.c.h.b16 %v885
      %v921 = vunpack.c.l.b16 %v886
      %v922 = vunpack.c.h.b16 %v886
      %v923 = vunpack.c.l.b16 %v887
      %v924 = vunpack.c.h.b16 %v887
      %v925 = vunpack.c.l.b16 %v888
      %v926 = vunpack.c.h.b16 %v888
      %v927 = vunpack.c.l.b16 %v889
      %v928 = vunpack.c.h.b16 %v889
      %v929 = vunpack.c.l.b16 %v890
      %v930 = vunpack.c.h.b16 %v890
      %v931 = vunpack.c.l.b16 %v891
      %v932 = vunpack.c.h.b16 %v891
      %v933 = vunpack.c.l.b16 %v892
      %v934 = vunpack.c.h.b16 %v892
      %v935 = vunpack.c.l.b16 %v893
      %v936 = vunpack.c.h.b16 %v893
      %v937 = vunpack.c.l.b16 %v894
      %v938 = vunpack.c.h.b16 %v894
      %v939 = vpack.c.b16 %v915, %v913
      %v940 = vpack.c.b16 %v916, %v914
      %v941 = vpack.c.b16 %v919, %v917
      %v942 = vpack.c.b16 %v920, %v918
      %v943 = vpack.c.b16 %v923, %v921
      %v944 = vpack.c.b16 %v924, %v922
      %v945 = vpack.c.b16 %v927, %v925
      %v946 = vpack.c.b16 %v928, %v926
      %v947 = vpack.c.b16 %v931, %v929
      %v948 = vpack.c.b16 %v932, %v930
      %v949 = vpack.c.b16 %v935, %v933
      %v950 = vpack.c.b16 %v936, %v934
      %v951 = vpack.c.b16 %v937, %v937
      %v952 = vpack.c.b16 %v938, %v938
      %vm965 = vcmask 818176
      %v967 = vsel %vm965, %v899, 0
      %vm969 = vcmask 1041408
      %v971 = vsel %vm969, %v951, 0
      %v974 = vsel %vm969, %v952, 0
      %976 = vmatpush.bf16.msra.mxu0 0
      %977 = vmatpush.bf16.msra.mxu0 %v971
      %978 = vmatpush.bf16.msra.mxu0 %v949
      %979 = vmatpush.bf16.msra.mxu0 %v947
      %980 = vmatpush.bf16.msra.mxu0 %v945
      %981 = vmatpush.bf16.msra.mxu0 %v943
      %982 = vmatpush.bf16.msra.mxu0 %v941
      %983 = vmatpush.bf16.msra.mxu0 %v939
      %984 = vmatmul.bf16.gmra.mxu0 %v967
      %v985 = vpop.f32.mrf.mxu0
      %v986 = vadd.f32 0.0, %v985
      %v987 = vpop.f32.mrf.mxu0
      %v988 = vadd.f32 0.0, %v987
      %989 = vdwg.mxu0
      %990 = vmatpush.bf16.msra.mxu0 0
      %991 = vmatpush.bf16.msra.mxu0 %v974
      %992 = vmatpush.bf16.msra.mxu0 %v950
      %993 = vmatpush.bf16.msra.mxu0 %v948
      %994 = vmatpush.bf16.msra.mxu0 %v946
      %995 = vmatpush.bf16.msra.mxu0 %v944
      %996 = vmatpush.bf16.msra.mxu0 %v942
      %997 = vmatpush.bf16.msra.mxu0 %v940
      %998 = vmatmul.bf16.gmra.mxu0 %v967
      %v999 = vpop.f32.mrf.mxu0
      %v1000 = vadd.f32 0.0, %v999
      %v1001 = vpop.f32.mrf.mxu0
      %v1002 = vadd.f32 0.0, %v1001
      %1003 = vdwg.mxu0
      %1004 = vst [vmem:[%s143] sm:$0xff] %v986
      %1005 = vst [vmem:[%s143 + $0x8] sm:$0xff] %v1000
      %1006 = vst [vmem:[%s143 + $0x10] sm:$0xf] %v988
      %1007 = vst [vmem:[%s143 + $0x18] sm:$0xf] %v1002
      %p1008 = scmp.lt.s32.totalorder %s13, 1
      %s1009 = scalar_select %p1008, %s13, 1
      %s1010 = smul.addr %s1009, 4
      %s1011 = smul.addr %s1010, 8
      %s1012 = scalar_lea.vmem %s2, %s1011
      // Predicated region
      $region29: #{pyconv2d.1} parent=27 // pred_check
        %p1013 = pneg %p78
      $region30: #{pyconv2d.1} parent=27 // pred_check_branch
        %1015 = sbr.rel (%p1013) target = $region32
      $region31: #{pyconv2d.1} parent=27 // pred_region
        _
      $region32: #{pyconv2d.1} parent=27 // pred_fallthru
        _
    $region28: #{pyconv2d.1} parent=5 // pred_fallthru
      _
    %p1016 = scmp.le.s32.totalorder 2, %s8
    // Predicated region
    $region33: #{pyconv2d.1} parent=5 // pred_check
      %p1017 = pneg %p1016
    $region34: #{pyconv2d.1} parent=5 // pred_check_branch
      %1019 = sbr.rel (%p1017) target = $region36
    $region35: #{pyconv2d.1} parent=5 // pred_region
      %s1020 = ssub.s32 %s8, 2
      // Predicated region
      $region37: #{pyconv2d.1} parent=35 // pred_check
        %p1021 = pneg %p84
      $region38: #{pyconv2d.1} parent=35 // pred_check_branch
        %1023 = sbr.rel (%p1021) target = $region40
      $region39: #{pyconv2d.1} parent=35 // pred_region
        %p1024 = scmp.lt.s32.totalorder %s14, 1
        %s1025 = scalar_select %p1024, %s14, 1
        %s1026 = smul.addr %s1025, 4
        %s1027 = smul.addr %s1026, 8
        %s1028 = scalar_lea.vmem %s2, %s1027
      $region40: #{pyconv2d.1} parent=35 // pred_fallthru
        _
    $region36: #{pyconv2d.1} parent=5 // pred_fallthru
      _
  $region6: #{pyconv2d.1} parent=0 // loop_footer
    %s12 = sadd.s32 1, %s8
  $region7: #{pyconv2d.1} parent=0 // loop_footer_branch
    %7 = sbr.rel target = $region3
  $region8: #{pyconv2d.1} parent=0 // loop_exit
    _

</llo_original>
